<compile_context>
chip_gen: v6e
topology: v6e:2x2x1
jax: 0.10.0
libtpu: 0.0.40
codegen_flags: <defaults>
</compile_context>

<pallas_src>
import math

import jax
import jax.numpy as jnp
from jax.experimental import pallas as pl
from jax.experimental.pallas import tpu as pltpu


def _make_kernel(KH, KW, C, O, TH, Wo, stride):
    T = KH * KW
    M = TH * Wo

    def kernel(x_ref, w_ref, b_ref, o_ref):
        # x_ref: (1, 1, TH_in, W_need, C)  padded NHWC input row-tile (compute dtype)
        # w_ref: (T, O, C)                 per-tap filters            (compute dtype)
        # b_ref: (O, 1)                    bias (f32)
        # o_ref: (1, O, TH*Wo)             output tile, NCHW-flattened (input dtype)
        acc = jnp.broadcast_to(b_ref[...], (O, M))          # f32, bias folded in
        for t in range(T):                                   # static -> fully unrolled
            kh, kw = t // KW, t % KW
            if stride == 1:
                xs = x_ref[0, 0, kh:kh + TH, kw:kw + Wo, :]
            else:
                # TODO(synk): strided in-VMEM tap slices (stride > 1) are
                # best-effort; module default / tested path is stride == 1.
                xs = x_ref[0, 0, pl.ds(kh, TH, stride), pl.ds(kw, Wo, stride), :]
            xs = xs.reshape(M, C)                            # lane dim stays C
            # (O, C) . (M, C)^T -> (O, M): canonical MXU pattern, f32 accumulation.
            acc = acc + jax.lax.dot_general(
                w_ref[t], xs,
                dimension_numbers=(((1,), (1,)), ((), ())),
                preferred_element_type=jnp.float32)
        o_ref[0] = acc.astype(o_ref.dtype)

    return kernel


def corr_conv_forward(x_nchw, weight, bias, stride=1, padding=0, *,
                      tm=512, compute_dtype=jnp.bfloat16):
    """Forward of CorrConv: plain conv2d (the module's custom autograd Function
    only changes its backward / correlation regularizer, not the forward output)."""
    N, C, H, W = x_nchw.shape
    O, Cw, KH, KW = weight.shape
    assert C == Cw
    Ho = (H + 2 * padding - KH) // stride + 1
    Wo = (W + 2 * padding - KW) // stride + 1
    T = KH * KW
    W_need = (Wo - 1) * stride + KW
    cbytes = jnp.dtype(compute_dtype).itemsize
    obytes = jnp.dtype(x_nchw.dtype).itemsize

    # ---- pick TH (output rows per grid step): M-tile ~= tm, lane-dense stores.
    step = 128 // math.gcd(Wo, 128)          # TH multiple of step => TH*Wo % 128 == 0
    TH = max(step, (max(tm // Wo, 1) // step) * step)

    def _tile_vmem(th):                      # rough double-buffered VMEM estimate
        th_in = (th - 1) * stride + KH
        return (2 * th_in * W_need * C * cbytes   # input tile (double-buffered)
                + 2 * O * th * Wo * obytes        # output tile (double-buffered)
                + T * O * C * cbytes              # resident weight
                + th * Wo * O * 4)                # f32 accumulator

    while TH > step and _tile_vmem(TH) > (20 << 20):
        TH -= step
    if TH >= Ho:
        TH = Ho                              # single row-tile per batch element
    n_h = -(-Ho // TH)
    Ho_pad = n_h * TH
    TH_in = (TH - 1) * stride + KH
    H_need = (Ho_pad - 1) * stride + KH

    # ---- glue: one cheap pass over the input (NO im2col expansion in HBM).
    x = jnp.transpose(x_nchw, (0, 2, 3, 1)).astype(compute_dtype)    # NHWC
    xp = jnp.pad(x, ((0, 0),
                     (padding, max(0, H_need - H - padding)),
                     (padding, max(0, W_need - W - padding)),
                     (0, 0)))[:, :H_need, :W_need, :]
    if n_h == 1:
        x_tiles = xp[:, None]                                        # (N,1,TH_in,W_need,C)
    else:                                    # row tiles with a small (KH-stride)-row halo
        x_tiles = jnp.stack(
            [xp[:, i * TH * stride:i * TH * stride + TH_in] for i in range(n_h)],
            axis=1)                                                  # (N,n_h,TH_in,W_need,C)

    # weight (O,C,KH,KW) -> (KH,KW,O,C) -> (T,O,C); matches tap/channel order in kernel
    w_r = jnp.transpose(weight, (2, 3, 0, 1)).reshape(T, O, C).astype(compute_dtype)
    b_r = bias.reshape(O, 1).astype(jnp.float32)

    vmem_limit = int(min(64 << 20, max(32 << 20, 2 * _tile_vmem(TH))))
    cost = pl.CostEstimate(
        flops=2 * N * Ho_pad * Wo * O * C * T,
        transcendentals=0,
        bytes_accessed=int(x_tiles.size * cbytes + w_r.size * cbytes
                           + b_r.size * 4 + N * O * Ho_pad * Wo * obytes))

    kernel = _make_kernel(KH, KW, C, O, TH, Wo, stride)
    out_p = pl.pallas_call(
        kernel,
        out_shape=jax.ShapeDtypeStruct((N, O, Ho_pad * Wo), x_nchw.dtype),
        grid_spec=pltpu.PrefetchScalarGridSpec(
            num_scalar_prefetch=0,
            grid=(N, n_h),
            in_specs=[
                pl.BlockSpec((1, 1, TH_in, W_need, C),
                             lambda n, i: (n, i, 0, 0, 0)),
                pl.BlockSpec((T, O, C), lambda n, i: (0, 0, 0)),
                pl.BlockSpec((O, 1), lambda n, i: (0, 0)),
            ],
            out_specs=pl.BlockSpec((1, O, TH * Wo), lambda n, i: (n, 0, i)),
        ),
        compiler_params=pltpu.CompilerParams(
            dimension_semantics=("parallel", "parallel"),
            vmem_limit_bytes=vmem_limit),
        cost_estimate=cost,
    )(x_tiles, w_r, b_r)

    # NCHW directly: just un-flatten the spatial dim and drop row padding.
    return out_p.reshape(N, O, Ho_pad, Wo)[:, :, :Ho, :]


if __name__ == "__main__":
    # Module config (small, consistent with CorrConv(input_features, output_features, k))
    N, Cin, H, W = 2, 4, 16, 16
    Cout, K = 8, 3
    stride, padding = 1, 1

    key = jax.random.PRNGKey(0)
    kx, kw = jax.random.split(key)
    x = jax.random.normal(kx, (N, Cin, H, W), dtype=jnp.float32)
    # __init__: weight ~ N(0, 0.01), bias zeros
    weight = 0.01 * jax.random.normal(kw, (Cout, Cin, K, K), dtype=jnp.float32)
    bias = jnp.zeros((Cout,), dtype=jnp.float32)

    # Reference (forward semantics of nn.functional.conv2d, NCHW / OIHW)
    ref = jax.lax.conv_general_dilated(
        x, weight,
        window_strides=(stride, stride),
        padding=((padding, padding), (padding, padding)),
        dimension_numbers=("NCHW", "OIHW", "NCHW"),
    ) + bias[None, :, None, None]

    # f32-operand path (single row-tile per image): must match the reference tightly.
    out_f32 = jax.block_until_ready(
        corr_conv_forward(x, weight, bias, stride=stride, padding=padding,
                          compute_dtype=jnp.float32))
    assert out_f32.shape == ref.shape == (N, Cout, H, W)
    assert jnp.allclose(out_f32, ref, atol=1e-5, rtol=1e-5)

    # f32-operand path with a small M tile -> exercises the multi row-tile grid.
    out_tiled = jax.block_until_ready(
        corr_conv_forward(x, weight, bias, stride=stride, padding=padding,
                          tm=128, compute_dtype=jnp.float32))
    assert out_tiled.shape == ref.shape
    assert jnp.allclose(out_tiled, ref, atol=1e-5, rtol=1e-5)

    # Default bf16-operand path (f32 accumulation): relaxed tolerance.
    out_bf16 = jax.block_until_ready(
        corr_conv_forward(x, weight, bias, stride=stride, padding=padding))
    assert out_bf16.shape == ref.shape
    assert jnp.allclose(out_bf16, ref, atol=2e-2, rtol=2e-2)

    print("KERNEL_OK")
</pallas_src>

<mosaic_0001>
module attributes {stable_mosaic.version = 11 : i64} {
  func.func @kernel(%arg0: i32, %arg1: i32, %arg2: memref<1x1x18x18x4xf32, #tpu.memory_space<vmem>>, %arg3: memref<9x8x4xf32, #tpu.memory_space<vmem>>, %arg4: memref<8x1xf32, #tpu.memory_space<vmem>>, %arg5: memref<1x8x256xf32, #tpu.memory_space<vmem>>) attributes {dimension_semantics = [#tpu.dimension_semantics<parallel>, #tpu.dimension_semantics<parallel>], iteration_bounds = array<i64: 2, 1>, scalar_prefetch = 0 : i64, scratch_operands = 0 : i64, tpu.core_type = #tpu.core_type<tc>, window_params = [{transform_indices = @transform_0, window_bounds = array<i64: 1, 1, 18, 18, 4>}, {pipeline_mode = #tpu.pipeline_mode<synchronous>, transform_indices = @transform_1, window_bounds = array<i64: 9, 8, 4>}, {pipeline_mode = #tpu.pipeline_mode<synchronous>, transform_indices = @transform_2, window_bounds = array<i64: 8, 1>}, {transform_indices = @transform_3, window_bounds = array<i64: 1, 8, 256>}]} {
    %c0 = arith.constant 0 : index
    %c0_0 = arith.constant 0 : index
    %0 = vector.load %arg4[%c0, %c0_0] : memref<8x1xf32, #tpu.memory_space<vmem>>, vector<8x1xf32>
    %1 = vector.shape_cast %0 : vector<8x1xf32> to vector<8x1xf32>
    %2 = vector.broadcast %1 : vector<8x1xf32> to vector<8x256xf32>
    %c0_1 = arith.constant 0 : index
    %c0_2 = arith.constant 0 : index
    %c0_3 = arith.constant 0 : index
    %c0_4 = arith.constant 0 : index
    %c0_5 = arith.constant 0 : index
    %3 = vector.load %arg2[%c0_1, %c0_2, %c0_3, %c0_4, %c0_5] : memref<1x1x18x18x4xf32, #tpu.memory_space<vmem>>, vector<1x1x16x16x4xf32>
    %4 = vector.shape_cast %3 : vector<1x1x16x16x4xf32> to vector<16x16x4xf32>
    %5 = vector.shape_cast %4 : vector<16x16x4xf32> to vector<256x4xf32>
    %c0_6 = arith.constant 0 : index
    %c0_7 = arith.constant 0 : index
    %c0_8 = arith.constant 0 : index
    %6 = vector.load %arg3[%c0_6, %c0_7, %c0_8] : memref<9x8x4xf32, #tpu.memory_space<vmem>>, vector<1x8x4xf32>
    %7 = vector.shape_cast %6 : vector<1x8x4xf32> to vector<8x4xf32>
    %cst = arith.constant dense<0.000000e+00> : vector<8x256xf32>
    %8 = tpu.matmul %7, %5, %cst {dimension_numbers = #tpu.dot_dimension_numbers<[1], [1], [0], [0], [0, 0, 1, 0], [], []>} : vector<8x4xf32>, vector<256x4xf32>, vector<8x256xf32> -> vector<8x256xf32>
    %9 = arith.addf %2, %8 : vector<8x256xf32>
    %c0_9 = arith.constant 0 : index
    %c0_10 = arith.constant 0 : index
    %c0_11 = arith.constant 0 : index
    %c1 = arith.constant 1 : index
    %c0_12 = arith.constant 0 : index
    %10 = vector.load %arg2[%c0_9, %c0_10, %c0_11, %c1, %c0_12] : memref<1x1x18x18x4xf32, #tpu.memory_space<vmem>>, vector<1x1x16x16x4xf32>
    %11 = vector.shape_cast %10 : vector<1x1x16x16x4xf32> to vector<16x16x4xf32>
    %12 = vector.shape_cast %11 : vector<16x16x4xf32> to vector<256x4xf32>
    %c1_13 = arith.constant 1 : index
    %c0_14 = arith.constant 0 : index
    %c0_15 = arith.constant 0 : index
    %13 = vector.load %arg3[%c1_13, %c0_14, %c0_15] : memref<9x8x4xf32, #tpu.memory_space<vmem>>, vector<1x8x4xf32>
    %14 = vector.shape_cast %13 : vector<1x8x4xf32> to vector<8x4xf32>
    %cst_16 = arith.constant dense<0.000000e+00> : vector<8x256xf32>
    %15 = tpu.matmul %14, %12, %cst_16 {dimension_numbers = #tpu.dot_dimension_numbers<[1], [1], [0], [0], [0, 0, 1, 0], [], []>} : vector<8x4xf32>, vector<256x4xf32>, vector<8x256xf32> -> vector<8x256xf32>
    %16 = arith.addf %9, %15 : vector<8x256xf32>
    %c0_17 = arith.constant 0 : index
    %c0_18 = arith.constant 0 : index
    %c0_19 = arith.constant 0 : index
    %c2 = arith.constant 2 : index
    %c0_20 = arith.constant 0 : index
    %17 = vector.load %arg2[%c0_17, %c0_18, %c0_19, %c2, %c0_20] : memref<1x1x18x18x4xf32, #tpu.memory_space<vmem>>, vector<1x1x16x16x4xf32>
    %18 = vector.shape_cast %17 : vector<1x1x16x16x4xf32> to vector<16x16x4xf32>
    %19 = vector.shape_cast %18 : vector<16x16x4xf32> to vector<256x4xf32>
    %c2_21 = arith.constant 2 : index
    %c0_22 = arith.constant 0 : index
    %c0_23 = arith.constant 0 : index
    %20 = vector.load %arg3[%c2_21, %c0_22, %c0_23] : memref<9x8x4xf32, #tpu.memory_space<vmem>>, vector<1x8x4xf32>
    %21 = vector.shape_cast %20 : vector<1x8x4xf32> to vector<8x4xf32>
    %cst_24 = arith.constant dense<0.000000e+00> : vector<8x256xf32>
    %22 = tpu.matmul %21, %19, %cst_24 {dimension_numbers = #tpu.dot_dimension_numbers<[1], [1], [0], [0], [0, 0, 1, 0], [], []>} : vector<8x4xf32>, vector<256x4xf32>, vector<8x256xf32> -> vector<8x256xf32>
    %23 = arith.addf %16, %22 : vector<8x256xf32>
    %c0_25 = arith.constant 0 : index
    %c0_26 = arith.constant 0 : index
    %c1_27 = arith.constant 1 : index
    %c0_28 = arith.constant 0 : index
    %c0_29 = arith.constant 0 : index
    %24 = vector.load %arg2[%c0_25, %c0_26, %c1_27, %c0_28, %c0_29] : memref<1x1x18x18x4xf32, #tpu.memory_space<vmem>>, vector<1x1x16x16x4xf32>
    %25 = vector.shape_cast %24 : vector<1x1x16x16x4xf32> to vector<16x16x4xf32>
    %26 = vector.shape_cast %25 : vector<16x16x4xf32> to vector<256x4xf32>
    %c3 = arith.constant 3 : index
    %c0_30 = arith.constant 0 : index
    %c0_31 = arith.constant 0 : index
    %27 = vector.load %arg3[%c3, %c0_30, %c0_31] : memref<9x8x4xf32, #tpu.memory_space<vmem>>, vector<1x8x4xf32>
    %28 = vector.shape_cast %27 : vector<1x8x4xf32> to vector<8x4xf32>
    %cst_32 = arith.constant dense<0.000000e+00> : vector<8x256xf32>
    %29 = tpu.matmul %28, %26, %cst_32 {dimension_numbers = #tpu.dot_dimension_numbers<[1], [1], [0], [0], [0, 0, 1, 0], [], []>} : vector<8x4xf32>, vector<256x4xf32>, vector<8x256xf32> -> vector<8x256xf32>
    %30 = arith.addf %23, %29 : vector<8x256xf32>
    %c0_33 = arith.constant 0 : index
    %c0_34 = arith.constant 0 : index
    %c1_35 = arith.constant 1 : index
    %c1_36 = arith.constant 1 : index
    %c0_37 = arith.constant 0 : index
    %31 = vector.load %arg2[%c0_33, %c0_34, %c1_35, %c1_36, %c0_37] : memref<1x1x18x18x4xf32, #tpu.memory_space<vmem>>, vector<1x1x16x16x4xf32>
    %32 = vector.shape_cast %31 : vector<1x1x16x16x4xf32> to vector<16x16x4xf32>
    %33 = vector.shape_cast %32 : vector<16x16x4xf32> to vector<256x4xf32>
    %c4 = arith.constant 4 : index
    %c0_38 = arith.constant 0 : index
    %c0_39 = arith.constant 0 : index
    %34 = vector.load %arg3[%c4, %c0_38, %c0_39] : memref<9x8x4xf32, #tpu.memory_space<vmem>>, vector<1x8x4xf32>
    %35 = vector.shape_cast %34 : vector<1x8x4xf32> to vector<8x4xf32>
    %cst_40 = arith.constant dense<0.000000e+00> : vector<8x256xf32>
    %36 = tpu.matmul %35, %33, %cst_40 {dimension_numbers = #tpu.dot_dimension_numbers<[1], [1], [0], [0], [0, 0, 1, 0], [], []>} : vector<8x4xf32>, vector<256x4xf32>, vector<8x256xf32> -> vector<8x256xf32>
    %37 = arith.addf %30, %36 : vector<8x256xf32>
    %c0_41 = arith.constant 0 : index
    %c0_42 = arith.constant 0 : index
    %c1_43 = arith.constant 1 : index
    %c2_44 = arith.constant 2 : index
    %c0_45 = arith.constant 0 : index
    %38 = vector.load %arg2[%c0_41, %c0_42, %c1_43, %c2_44, %c0_45] : memref<1x1x18x18x4xf32, #tpu.memory_space<vmem>>, vector<1x1x16x16x4xf32>
    %39 = vector.shape_cast %38 : vector<1x1x16x16x4xf32> to vector<16x16x4xf32>
    %40 = vector.shape_cast %39 : vector<16x16x4xf32> to vector<256x4xf32>
    %c5 = arith.constant 5 : index
    %c0_46 = arith.constant 0 : index
    %c0_47 = arith.constant 0 : index
    %41 = vector.load %arg3[%c5, %c0_46, %c0_47] : memref<9x8x4xf32, #tpu.memory_space<vmem>>, vector<1x8x4xf32>
    %42 = vector.shape_cast %41 : vector<1x8x4xf32> to vector<8x4xf32>
    %cst_48 = arith.constant dense<0.000000e+00> : vector<8x256xf32>
    %43 = tpu.matmul %42, %40, %cst_48 {dimension_numbers = #tpu.dot_dimension_numbers<[1], [1], [0], [0], [0, 0, 1, 0], [], []>} : vector<8x4xf32>, vector<256x4xf32>, vector<8x256xf32> -> vector<8x256xf32>
    %44 = arith.addf %37, %43 : vector<8x256xf32>
    %c0_49 = arith.constant 0 : index
    %c0_50 = arith.constant 0 : index
    %c2_51 = arith.constant 2 : index
    %c0_52 = arith.constant 0 : index
    %c0_53 = arith.constant 0 : index
    %45 = vector.load %arg2[%c0_49, %c0_50, %c2_51, %c0_52, %c0_53] : memref<1x1x18x18x4xf32, #tpu.memory_space<vmem>>, vector<1x1x16x16x4xf32>
    %46 = vector.shape_cast %45 : vector<1x1x16x16x4xf32> to vector<16x16x4xf32>
    %47 = vector.shape_cast %46 : vector<16x16x4xf32> to vector<256x4xf32>
    %c6 = arith.constant 6 : index
    %c0_54 = arith.constant 0 : index
    %c0_55 = arith.constant 0 : index
    %48 = vector.load %arg3[%c6, %c0_54, %c0_55] : memref<9x8x4xf32, #tpu.memory_space<vmem>>, vector<1x8x4xf32>
    %49 = vector.shape_cast %48 : vector<1x8x4xf32> to vector<8x4xf32>
    %cst_56 = arith.constant dense<0.000000e+00> : vector<8x256xf32>
    %50 = tpu.matmul %49, %47, %cst_56 {dimension_numbers = #tpu.dot_dimension_numbers<[1], [1], [0], [0], [0, 0, 1, 0], [], []>} : vector<8x4xf32>, vector<256x4xf32>, vector<8x256xf32> -> vector<8x256xf32>
    %51 = arith.addf %44, %50 : vector<8x256xf32>
    %c0_57 = arith.constant 0 : index
    %c0_58 = arith.constant 0 : index
    %c2_59 = arith.constant 2 : index
    %c1_60 = arith.constant 1 : index
    %c0_61 = arith.constant 0 : index
    %52 = vector.load %arg2[%c0_57, %c0_58, %c2_59, %c1_60, %c0_61] : memref<1x1x18x18x4xf32, #tpu.memory_space<vmem>>, vector<1x1x16x16x4xf32>
    %53 = vector.shape_cast %52 : vector<1x1x16x16x4xf32> to vector<16x16x4xf32>
    %54 = vector.shape_cast %53 : vector<16x16x4xf32> to vector<256x4xf32>
    %c7 = arith.constant 7 : index
    %c0_62 = arith.constant 0 : index
    %c0_63 = arith.constant 0 : index
    %55 = vector.load %arg3[%c7, %c0_62, %c0_63] : memref<9x8x4xf32, #tpu.memory_space<vmem>>, vector<1x8x4xf32>
    %56 = vector.shape_cast %55 : vector<1x8x4xf32> to vector<8x4xf32>
    %cst_64 = arith.constant dense<0.000000e+00> : vector<8x256xf32>
    %57 = tpu.matmul %56, %54, %cst_64 {dimension_numbers = #tpu.dot_dimension_numbers<[1], [1], [0], [0], [0, 0, 1, 0], [], []>} : vector<8x4xf32>, vector<256x4xf32>, vector<8x256xf32> -> vector<8x256xf32>
    %58 = arith.addf %51, %57 : vector<8x256xf32>
    %c0_65 = arith.constant 0 : index
    %c0_66 = arith.constant 0 : index
    %c2_67 = arith.constant 2 : index
    %c2_68 = arith.constant 2 : index
    %c0_69 = arith.constant 0 : index
    %59 = vector.load %arg2[%c0_65, %c0_66, %c2_67, %c2_68, %c0_69] : memref<1x1x18x18x4xf32, #tpu.memory_space<vmem>>, vector<1x1x16x16x4xf32>
    %60 = vector.shape_cast %59 : vector<1x1x16x16x4xf32> to vector<16x16x4xf32>
    %61 = vector.shape_cast %60 : vector<16x16x4xf32> to vector<256x4xf32>
    %c8 = arith.constant 8 : index
    %c0_70 = arith.constant 0 : index
    %c0_71 = arith.constant 0 : index
    %62 = vector.load %arg3[%c8, %c0_70, %c0_71] : memref<9x8x4xf32, #tpu.memory_space<vmem>>, vector<1x8x4xf32>
    %63 = vector.shape_cast %62 : vector<1x8x4xf32> to vector<8x4xf32>
    %cst_72 = arith.constant dense<0.000000e+00> : vector<8x256xf32>
    %64 = tpu.matmul %63, %61, %cst_72 {dimension_numbers = #tpu.dot_dimension_numbers<[1], [1], [0], [0], [0, 0, 1, 0], [], []>} : vector<8x4xf32>, vector<256x4xf32>, vector<8x256xf32> -> vector<8x256xf32>
    %65 = arith.addf %58, %64 : vector<8x256xf32>
    %c0_73 = arith.constant 0 : index
    %c0_74 = arith.constant 0 : index
    %c0_75 = arith.constant 0 : index
    %66 = vector.load %arg5[%c0_73, %c0_74, %c0_75] : memref<1x8x256xf32, #tpu.memory_space<vmem>>, vector<1x8x256xf32>
    %67 = vector.shape_cast %66 : vector<1x8x256xf32> to vector<8x256xf32>
    %68 = vector.shape_cast %65 : vector<8x256xf32> to vector<1x8x256xf32>
    tpu.vector_store %arg5[%c0_73, %c0_74, %c0_75], %68 {strides = array<i32>} : memref<1x8x256xf32, #tpu.memory_space<vmem>>, vector<1x8x256xf32>,
    return
  }
  func.func @transform_0(%arg0: i32, %arg1: i32) -> (i32, i32, i32, i32, i32) {
    %c0_i32 = arith.constant 0 : i32
    %c0_i32_0 = arith.constant 0 : i32
    %c0_i32_1 = arith.constant 0 : i32
    %c0_i32_2 = arith.constant 0 : i32
    return %arg0, %arg1, %c0_i32, %c0_i32_0, %c0_i32_1 : i32, i32, i32, i32, i32
  }
  func.func @transform_1(%arg0: i32, %arg1: i32) -> (i32, i32, i32) {
    %c0_i32 = arith.constant 0 : i32
    %c0_i32_0 = arith.constant 0 : i32
    %c0_i32_1 = arith.constant 0 : i32
    %c0_i32_2 = arith.constant 0 : i32
    return %c0_i32, %c0_i32_0, %c0_i32_1 : i32, i32, i32
  }
  func.func @transform_2(%arg0: i32, %arg1: i32) -> (i32, i32) {
    %c0_i32 = arith.constant 0 : i32
    %c0_i32_0 = arith.constant 0 : i32
    %c0_i32_1 = arith.constant 0 : i32
    return %c0_i32, %c0_i32_0 : i32, i32
  }
  func.func @transform_3(%arg0: i32, %arg1: i32) -> (i32, i32, i32) {
    %c0_i32 = arith.constant 0 : i32
    %c0_i32_0 = arith.constant 0 : i32
    return %arg0, %c0_i32, %arg1 : i32, i32, i32
  }
}

</mosaic_0001>

<llo_original>
// kernel: tpu_custom_call.1
$region0: #{tpu_custom_call.1}
  #allocation0 [shape = 'u32[]', space=smem, size = 0x4, offset = 0x4, fixed_abs, tag = 'smem constant byte address 0x4 - core index']
  #allocation1 [shape = 'u32[144,128]{1,0:T(1,128)}', space=vmem, size = 0x12000, scoped, tag = 'internal scratch']
  %s0 = inlined_call_operand.vmem [shape: f32[2,1,18,18,4], index: 0, kind: input, shape index: {}]
  %s1 = inlined_call_operand.vmem [shape: f32[9,8,4], index: 1, kind: input, shape index: {}]
  %s2 = inlined_call_operand.vmem [shape: f32[8,1], index: 2, kind: input, shape index: {}]
  %s3 = inlined_call_operand.hbm [shape: f32[2,8,256], index: 3, kind: output, shape index: {}]
  %s4 = sld [smem:[#allocation0]]
  $region45: #{tpu_custom_call.1} parent=0
    _
  %s6 = ssub.s32 1, %s4
  %s7 = scalar_select 0, %s6, %s4
  $region1: #{tpu_custom_call.1} parent=0
    #allocation2 [shape = 'u8[16384]{0}', space=vmem, size = 0x4000, scoped, tag = 'output window, operand 0']
    #allocation3 [shape = 's32[2]{0}', space=sflag, size = 0x8, scoped, tag = 'scoped memory for tpu_custom_call.1']
    %8 = vsyncpa [#allocation3], 0
    %s9 = scalar_lea.sflag [#allocation3], 1
    %10 = vsyncpa %s9, 0
    loop: start=0, step=1, limit=4
    $region2: #{tpu_custom_call.1} parent=1 // loop_pre_header
      _
    $region3: #{tpu_custom_call.1} parent=1 // loop_header
      %s12 = sphi 0, %s16
      %p13 = scmp.ge.s32.totalorder %s12, 4
      %s19 = sphi 0, %s31
      %s20 = sphi 0, %s27
      %s21 = sphi 0, %s19
      %s22 = sphi 0, %s20
      %s23 = sphi 0, %s21
      %s24 = sphi 0, %s22
      %s36 = sphi 0, %s38
      %s39 = sphi 0, %s36
      %s40 = sphi 0, %s39
      %s56 = sphi 0, %s40
      %s60 = sphi 0, %s60
      %s62 = sphi 0, %s60
      %s63 = sphi 0, %s62
      %s77 = sphi 0, %s63
      %s81 = sphi 0, %s81
      %s83 = sphi 0, %s81
      %s84 = sphi 0, %s83
      %s98 = sphi 0, %s84
      %s106 = sphi 0, %s108
      %s109 = sphi 0, %s106
      %s110 = sphi 0, %s109
      %s126 = sphi 0, %s110
    $region4: #{tpu_custom_call.1} parent=1 // loop_header_branch
      %15 = sbr.rel (%p13) target = $region8
    $region5: #{tpu_custom_call.1} parent=1 // loop_body
      %s17 = ssub.s32 %s12, 1
      %s18 = ssub.s32 %s12, 2
      %s25 = sadd.s32 1, %s20
      %p26 = scmp.ge.s32.totalorder %s25, 1
      %s27 = scalar_select %p26, 0, %s25
      %s28 = sadd.s32 1, %s19
      %s29 = scalar_select %p26, %s28, %s19
      %p30 = scmp.ge.s32.totalorder %s29, 2
      %s31 = scalar_select %p30, 0, %s29
      %s32 = ssub.s32 %s19, %s31
      %s33 = ssub.s32 %s20, %s27
      %s34 = sor.u32 %s32, %s33
      %p35 = scmp.eq.s32.totalorder %s34, 0
      %s37 = sadd.s32 %s36, 1
      %s38 = scalar_select %p35, %s36, %s37
      %p41 = pneg %p35
      %p42 = scmp.eq.s32.totalorder %s12, 1
      %p43 = por %p41, %p42
      %p44 = scmp.ne.s32.totalorder %s36, %s39
      %p45 = scmp.eq.s32.totalorder %s12, 0
      %p46 = por %p44, %p45
      %p47 = scmp.ne.s32.totalorder %s36, %s39
      %p48 = scmp.eq.s32.totalorder %s17, 1
      %p49 = por %p47, %p48
      %p50 = scmp.ne.s32.totalorder %s39, %s40
      %p51 = scmp.eq.s32.totalorder %s17, 0
      %p52 = por %p50, %p51
      %p53 = scmp.ne.s32.totalorder %s39, %s40
      %p54 = scmp.eq.s32.totalorder %s18, 1
      %p55 = por %p53, %p54
      %p57 = scmp.ne.s32.totalorder %s40, %s56
      %p58 = scmp.eq.s32.totalorder %s18, 0
      %p59 = por %p57, %p58
      %s61 = sadd.s32 %s60, 1
      %p64 = scmp.eq.s32.totalorder %s12, 1
      %p65 = scmp.ne.s32.totalorder %s60, %s62
      %p66 = scmp.eq.s32.totalorder %s12, 0
      %p67 = por %p65, %p66
      %p68 = scmp.ne.s32.totalorder %s60, %s62
      %p69 = scmp.eq.s32.totalorder %s17, 1
      %p70 = por %p68, %p69
      %p71 = scmp.ne.s32.totalorder %s62, %s63
      %p72 = scmp.eq.s32.totalorder %s17, 0
      %p73 = por %p71, %p72
      %p74 = scmp.ne.s32.totalorder %s62, %s63
      %p75 = scmp.eq.s32.totalorder %s18, 1
      %p76 = por %p74, %p75
      %p78 = scmp.ne.s32.totalorder %s63, %s77
      %p79 = scmp.eq.s32.totalorder %s18, 0
      %p80 = por %p78, %p79
      %s82 = sadd.s32 %s81, 1
      %p85 = scmp.eq.s32.totalorder %s12, 1
      %p86 = scmp.ne.s32.totalorder %s81, %s83
      %p87 = scmp.eq.s32.totalorder %s12, 0
      %p88 = por %p86, %p87
      %p89 = scmp.ne.s32.totalorder %s81, %s83
      %p90 = scmp.eq.s32.totalorder %s17, 1
      %p91 = por %p89, %p90
      %p92 = scmp.ne.s32.totalorder %s83, %s84
      %p93 = scmp.eq.s32.totalorder %s17, 0
      %p94 = por %p92, %p93
      %p95 = scmp.ne.s32.totalorder %s83, %s84
      %p96 = scmp.eq.s32.totalorder %s18, 1
      %p97 = por %p95, %p96
      %p99 = scmp.ne.s32.totalorder %s84, %s98
      %p100 = scmp.eq.s32.totalorder %s18, 0
      %p101 = por %p99, %p100
      %s102 = ssub.s32 %s19, %s31
      %s103 = ssub.s32 %s20, %s27
      %s104 = sor.u32 %s102, %s103
      %p105 = scmp.eq.s32.totalorder %s104, 0
      %s107 = sadd.s32 %s106, 1
      %s108 = scalar_select %p105, %s106, %s107
      %p111 = pneg %p105
      %p112 = scmp.eq.s32.totalorder %s12, 1
      %p113 = por %p111, %p112
      %p114 = scmp.ne.s32.totalorder %s106, %s109
      %p115 = scmp.eq.s32.totalorder %s12, 0
      %p116 = por %p114, %p115
      %p117 = scmp.ne.s32.totalorder %s106, %s109
      %p118 = scmp.eq.s32.totalorder %s17, 1
      %p119 = por %p117, %p118
      %p120 = scmp.ne.s32.totalorder %s109, %s110
      %p121 = scmp.eq.s32.totalorder %s17, 0
      %p122 = por %p120, %p121
      %p123 = scmp.ne.s32.totalorder %s109, %s110
      %p124 = scmp.eq.s32.totalorder %s18, 1
      %p125 = por %p123, %p124
      %p127 = scmp.ne.s32.totalorder %s110, %s126
      %p128 = scmp.eq.s32.totalorder %s18, 0
      %p129 = por %p127, %p128
      %p130 = scmp.le.s32.totalorder 1, %s12
      %p131 = scmp.lt.s32.totalorder %s12, 3
      %p132 = pnand %p130, %p131
      %p133 = pneg %p132
      // Predicated region
      $region9: #{tpu_custom_call.1} parent=5 // pred_check
        _
      $region10: #{tpu_custom_call.1} parent=5 // pred_check_branch
        %135 = sbr.rel (%p132) target = $region12
      $region11: #{tpu_custom_call.1} parent=5 // pred_region
        %s136 = ssub.s32 %s12, 1
        // Predicated region
        $region13: #{tpu_custom_call.1} parent=11 // pred_check
          %p137 = pneg %p73
        $region14: #{tpu_custom_call.1} parent=11 // pred_check_branch
          %139 = sbr.rel (%p137) target = $region16
        $region15: #{tpu_custom_call.1} parent=11 // pred_region
          _
        $region16: #{tpu_custom_call.1} parent=11 // pred_fallthru
          _
        // Predicated region
        $region17: #{tpu_custom_call.1} parent=11 // pred_check
          %p140 = pneg %p94
        $region18: #{tpu_custom_call.1} parent=11 // pred_check_branch
          %142 = sbr.rel (%p140) target = $region20
        $region19: #{tpu_custom_call.1} parent=11 // pred_region
          _
        $region20: #{tpu_custom_call.1} parent=11 // pred_fallthru
          _
      $region12: #{tpu_custom_call.1} parent=5 // pred_fallthru
        _
      %p143 = scmp.lt.s32.totalorder %s12, 2
      // Predicated region
      $region21: #{tpu_custom_call.1} parent=5 // pred_check
        %p144 = pneg %p143
      $region22: #{tpu_custom_call.1} parent=5 // pred_check_branch
        %146 = sbr.rel (%p144) target = $region24
      $region23: #{tpu_custom_call.1} parent=5 // pred_region
        // Predicated region
        $region25: #{tpu_custom_call.1} parent=23 // pred_check
          %p147 = pneg %p46
        $region26: #{tpu_custom_call.1} parent=23 // pred_check_branch
          %149 = sbr.rel (%p147) target = $region28
        $region27: #{tpu_custom_call.1} parent=23 // pred_region
          %p150 = scmp.lt.s32.totalorder %s19, 1
          %s151 = scalar_select %p150, %s19, 1
          %p152 = scmp.lt.s32.totalorder %s20, 0
          %s153 = scalar_select %p152, %s20, 0
          %s154 = smul.addr %s153, 54
          %s155 = smul.addr %s151, 54
          %s156 = sadd.s32 %s154, %s155
          %s157 = smul.addr %s156, 8
          %s158 = scalar_lea.vmem %s0, %s157
        $region28: #{tpu_custom_call.1} parent=23 // pred_fallthru
          _
      $region24: #{tpu_custom_call.1} parent=5 // pred_fallthru
        _
      %p159 = scmp.le.s32.totalorder 1, %s12
      %p160 = scmp.lt.s32.totalorder %s12, 3
      %p161 = pnand %p159, %p160
      %p162 = pneg %p161
      // Predicated region
      $region29: #{tpu_custom_call.1} parent=5 // pred_check
        _
      $region30: #{tpu_custom_call.1} parent=5 // pred_check_branch
        %164 = sbr.rel (%p161) target = $region32
      $region31: #{tpu_custom_call.1} parent=5 // pred_region
        %s165 = ssub.s32 %s12, 1
        %p166 = scmp.lt.s32.totalorder %s21, 1
        %s167 = scalar_select %p166, %s21, 1
        %p168 = scmp.lt.s32.totalorder %s22, 0
        %s169 = scalar_select %p168, %s22, 0
        %s170 = smul.addr %s169, 54
        %s171 = smul.addr %s167, 54
        %s172 = sadd.s32 %s170, %s171
        %s173 = smul.addr %s172, 8
        %s174 = scalar_lea.vmem %s0, %s173
        %p175 = pneg %p52
        %p176 = pneg %p49
        %p177 = pneg %p73
        %p178 = pneg %p70
        %p179 = pneg %p94
        %p180 = pneg %p91
        %p181 = pneg %p122
        %p182 = pneg %p119
        %s183 = sand.u32 %s109, 1
        %s184 = scalar_lea.sflag [#allocation3], %s183
        %s185 = sand.u32 %s109, 1
        %s186 = smul.addr %s185, 16
        %s187 = scalar_lea.vmem [#allocation2], %s186
        %p188 = scmp.lt.s32.totalorder %s21, 1
        %s189 = scalar_select %p188, %s21, 1
        %p190 = scmp.lt.s32.totalorder %s22, 0
        %s191 = scalar_select %p190, %s22, 0
        %s192 = smul.addr %s191, 54
        %s193 = smul.addr %s189, 54
        %s194 = sadd.s32 %s192, %s193
        %s195 = smul.addr %s194, 8
        %s196 = scalar_lea.vmem %s0, %s195
        %s197 = smul.u32 2, %s22
        %v198 = vld [vmem:[%s2] sm:$0xff]
        %200 = vset.pattern.permute.xlu0 0
        %201 = vperm.xlu0 %200, %v198
        %v202 = vpop.permute.xlu0 %201
        %v204 = vld [vmem:[%s196] sm:$0xff]
        %v205 = vld [vmem:[%s196 + $0x8] sm:$0xff]
        %v206 = vld [vmem:[%s196 + $0x18] sm:$0xff]
        %v207 = vld [vmem:[%s196 + $0x20] sm:$0xff]
        %v208 = vld [vmem:[%s196 + $0x30] sm:$0xff]
        %v209 = vld [vmem:[%s196 + $0x38] sm:$0xff]
        %v210 = vld [vmem:[%s196 + $0x48] sm:$0xff]
        %v211 = vld [vmem:[%s196 + $0x50] sm:$0xff]
        %v212 = vld [vmem:[%s196 + $0x60] sm:$0xff]
        %v213 = vld [vmem:[%s196 + $0x68] sm:$0xff]
        %v214 = vld [vmem:[%s196 + $0x78] sm:$0xff]
        %v215 = vld [vmem:[%s196 + $0x80] sm:$0xff]
        %v216 = vld [vmem:[%s196 + $0x90] sm:$0xff]
        %v217 = vld [vmem:[%s196 + $0x98] sm:$0xff]
        %v218 = vld [vmem:[%s196 + $0xa8] sm:$0xff]
        %v219 = vld [vmem:[%s196 + $0xb0] sm:$0xff]
        %v220 = vld [vmem:[%s196 + $0xc0] sm:$0xff]
        %v221 = vld [vmem:[%s196 + $0xc8] sm:$0xff]
        %v222 = vld [vmem:[%s196 + $0xd8] sm:$0xff]
        %v223 = vld [vmem:[%s196 + $0xe0] sm:$0xff]
        %v224 = vld [vmem:[%s196 + $0xf0] sm:$0xff]
        %v225 = vld [vmem:[%s196 + $0xf8] sm:$0xff]
        %v226 = vld [vmem:[%s196 + $0x108] sm:$0xff]
        %v227 = vld [vmem:[%s196 + $0x110] sm:$0xff]
        %v228 = vld [vmem:[%s196 + $0x120] sm:$0xff]
        %v229 = vld [vmem:[%s196 + $0x128] sm:$0xff]
        %v230 = vld [vmem:[%s196 + $0x138] sm:$0xff]
        %v231 = vld [vmem:[%s196 + $0x140] sm:$0xff]
        %v232 = vld [vmem:[%s196 + $0x150] sm:$0xff]
        %v233 = vld [vmem:[%s196 + $0x158] sm:$0xff]
        %v234 = vld [vmem:[%s196 + $0x168] sm:$0xff]
        %v235 = vld [vmem:[%s196 + $0x170] sm:$0xff]
        %v236 = vld [vmem:[%s1] sm:$0xff]
        %vm237 = vcmask 31744
        %v239 = vsel %vm237, %v236, 0
        %v242 = vsel %vm237, %v204, 0
        %v245 = vsel %vm237, %v205, 0
        %v248 = vsel %vm237, %v206, 0
        %v251 = vsel %vm237, %v207, 0
        %v254 = vsel %vm237, %v208, 0
        %v257 = vsel %vm237, %v209, 0
        %v260 = vsel %vm237, %v210, 0
        %v263 = vsel %vm237, %v211, 0
        %v266 = vsel %vm237, %v212, 0
        %v269 = vsel %vm237, %v213, 0
        %v272 = vsel %vm237, %v214, 0
        %v275 = vsel %vm237, %v215, 0
        %v278 = vsel %vm237, %v216, 0
        %v281 = vsel %vm237, %v217, 0
        %v284 = vsel %vm237, %v218, 0
        %v287 = vsel %vm237, %v219, 0
        %v290 = vsel %vm237, %v220, 0
        %v293 = vsel %vm237, %v221, 0
        %v296 = vsel %vm237, %v222, 0
        %v299 = vsel %vm237, %v223, 0
        %v302 = vsel %vm237, %v224, 0
        %v305 = vsel %vm237, %v225, 0
        %v308 = vsel %vm237, %v226, 0
        %v311 = vsel %vm237, %v227, 0
        %v314 = vsel %vm237, %v228, 0
        %v317 = vsel %vm237, %v229, 0
        %v320 = vsel %vm237, %v230, 0
        %v323 = vsel %vm237, %v231, 0
        %v326 = vsel %vm237, %v232, 0
        %v329 = vsel %vm237, %v233, 0
        %v332 = vsel %vm237, %v234, 0
        %v335 = vsel %vm237, %v235, 0
        %337 = vmatprep.subr.mxu0 0.0
        %338 = vmatpush1.xpose.msra.mxu0 %v287
        %339 = vmatprep.subr.mxu0 0.0
        %340 = vmatpush1.xpose.msra.mxu0 %v284
        %341 = vmatprep.subr.mxu0 0.0
        %342 = vmatpush1.xpose.msra.mxu0 %v281
        %343 = vmatprep.subr.mxu0 0.0
        %344 = vmatpush1.xpose.msra.mxu0 %v278
        %345 = vmatprep.subr.mxu0 0.0
        %346 = vmatpush1.xpose.msra.mxu0 %v275
        %347 = vmatprep.subr.mxu0 0.0
        %348 = vmatpush1.xpose.msra.mxu0 %v272
        %349 = vmatprep.subr.mxu0 0.0
        %350 = vmatpush1.xpose.msra.mxu0 %v269
        %351 = vmatprep.subr.mxu0 0.0
        %352 = vmatpush1.xpose.msra.mxu0 %v266
        %353 = vmatprep.subr.mxu0 0.0
        %354 = vmatpush1.xpose.msra.mxu0 %v263
        %355 = vmatprep.subr.mxu0 0.0
        %356 = vmatpush1.xpose.msra.mxu0 %v260
        %357 = vmatprep.subr.mxu0 0.0
        %358 = vmatpush1.xpose.msra.mxu0 %v257
        %359 = vmatprep.subr.mxu0 0.0
        %360 = vmatpush1.xpose.msra.mxu0 %v254
        %361 = vmatprep.subr.mxu0 0.0
        %362 = vmatpush1.xpose.msra.mxu0 %v251
        %363 = vmatprep.subr.mxu0 0.0
        %364 = vmatpush1.xpose.msra.mxu0 %v248
        %365 = vmatprep.subr.mxu0 0.0
        %366 = vmatpush1.xpose.msra.mxu0 %v245
        %367 = vmatprep.subr.mxu0 0.0
        %368 = vmatpush1.xpose.msra.mxu0 %v242
        %369 = vmatprep.subr.mxu0 0.0
        %370 = vmatpush2.xpose.msra.mxu0 %v335
        %371 = vmatprep.subr.mxu0 0.0
        %372 = vmatpush2.xpose.msra.mxu0 %v332
        %373 = vmatprep.subr.mxu0 0.0
        %374 = vmatpush2.xpose.msra.mxu0 %v329
        %375 = vmatprep.subr.mxu0 0.0
        %376 = vmatpush2.xpose.msra.mxu0 %v326
        %377 = vmatprep.subr.mxu0 0.0
        %378 = vmatpush2.xpose.msra.mxu0 %v323
        %379 = vmatprep.subr.mxu0 0.0
        %380 = vmatpush2.xpose.msra.mxu0 %v320
        %381 = vmatprep.subr.mxu0 0.0
        %382 = vmatpush2.xpose.msra.mxu0 %v317
        %383 = vmatprep.subr.mxu0 0.0
        %384 = vmatpush2.xpose.msra.mxu0 %v314
        %385 = vmatprep.subr.mxu0 0.0
        %386 = vmatpush2.xpose.msra.mxu0 %v311
        %387 = vmatprep.subr.mxu0 0.0
        %388 = vmatpush2.xpose.msra.mxu0 %v308
        %389 = vmatprep.subr.mxu0 0.0
        %390 = vmatpush2.xpose.msra.mxu0 %v305
        %391 = vmatprep.subr.mxu0 0.0
        %392 = vmatpush2.xpose.msra.mxu0 %v302
        %393 = vmatprep.subr.mxu0 0.0
        %394 = vmatpush2.xpose.msra.mxu0 %v299
        %395 = vmatprep.subr.mxu0 0.0
        %396 = vmatpush2.xpose.msra.mxu0 %v296
        %397 = vmatprep.subr.mxu0 0.0
        %398 = vmatpush2.xpose.msra.mxu0 %v293
        %399 = vmatprep.subr.mxu0 0.0
        %400 = vmatpush2.xpose.msra.mxu0 %v290
        %401 = vmatprep.mubr.f32.mxu0 0.0
        %402 = vmatmul.mubr.f32.gmra.mxu0 %v239
        %v403 = vpop.f32.mrf.mxu0
        %v404 = vadd.f32 0.0, %v403
        %v405 = vpop.f32.mrf.mxu0
        %v406 = vadd.f32 0.0, %v405
        %407 = vdwg.mxu0
        %v408 = vadd.f32 %v202, %v404
        %v409 = vadd.f32 %v202, %v406
        %v410 = vld [vmem:[%s196 + $0x1] sm:$0xff]
        %v411 = vld [vmem:[%s196 + $0x9] sm:$0xff]
        %v412 = vld [vmem:[%s196 + $0x19] sm:$0xff]
        %v413 = vld [vmem:[%s196 + $0x21] sm:$0xff]
        %v414 = vld [vmem:[%s196 + $0x31] sm:$0xff]
        %v415 = vld [vmem:[%s196 + $0x39] sm:$0xff]
        %v416 = vld [vmem:[%s196 + $0x49] sm:$0xff]
        %v417 = vld [vmem:[%s196 + $0x51] sm:$0xff]
        %v418 = vld [vmem:[%s196 + $0x61] sm:$0xff]
        %v419 = vld [vmem:[%s196 + $0x69] sm:$0xff]
        %v420 = vld [vmem:[%s196 + $0x79] sm:$0xff]
        %v421 = vld [vmem:[%s196 + $0x81] sm:$0xff]
        %v422 = vld [vmem:[%s196 + $0x91] sm:$0xff]
        %v423 = vld [vmem:[%s196 + $0x99] sm:$0xff]
        %v424 = vld [vmem:[%s196 + $0xa9] sm:$0xff]
        %v425 = vld [vmem:[%s196 + $0xb1] sm:$0xff]
        %v426 = vld [vmem:[%s196 + $0xc1] sm:$0xff]
        %v427 = vld [vmem:[%s196 + $0xc9] sm:$0xff]
        %v428 = vld [vmem:[%s196 + $0xd9] sm:$0xff]
        %v429 = vld [vmem:[%s196 + $0xe1] sm:$0xff]
        %v430 = vld [vmem:[%s196 + $0xf1] sm:$0xff]
        %v431 = vld [vmem:[%s196 + $0xf9] sm:$0xff]
        %v432 = vld [vmem:[%s196 + $0x109] sm:$0xff]
        %v433 = vld [vmem:[%s196 + $0x111] sm:$0xff]
        %v434 = vld [vmem:[%s196 + $0x121] sm:$0xff]
        %v435 = vld [vmem:[%s196 + $0x129] sm:$0xff]
        %v436 = vld [vmem:[%s196 + $0x139] sm:$0xff]
        %v437 = vld [vmem:[%s196 + $0x141] sm:$0xff]
        %v438 = vld [vmem:[%s196 + $0x151] sm:$0xff]
        %v439 = vld [vmem:[%s196 + $0x159] sm:$0xff]
        %v440 = vld [vmem:[%s196 + $0x169] sm:$0xff]
        %v441 = vld [vmem:[%s196 + $0x171] sm:$0xff]
        %s442 = scalar_lea.vmem %s1, 8
        %v443 = vld [vmem:[%s442] sm:$0xff]
        %v445 = vsel %vm237, %v443, 0
        %v448 = vsel %vm237, %v410, 0
        %v451 = vsel %vm237, %v411, 0
        %v454 = vsel %vm237, %v412, 0
        %v457 = vsel %vm237, %v413, 0
        %v460 = vsel %vm237, %v414, 0
        %v463 = vsel %vm237, %v415, 0
        %v466 = vsel %vm237, %v416, 0
        %v469 = vsel %vm237, %v417, 0
        %v472 = vsel %vm237, %v418, 0
        %v475 = vsel %vm237, %v419, 0
        %v478 = vsel %vm237, %v420, 0
        %v481 = vsel %vm237, %v421, 0
        %v484 = vsel %vm237, %v422, 0
        %v487 = vsel %vm237, %v423, 0
        %v490 = vsel %vm237, %v424, 0
        %v493 = vsel %vm237, %v425, 0
        %v496 = vsel %vm237, %v426, 0
        %v499 = vsel %vm237, %v427, 0
        %v502 = vsel %vm237, %v428, 0
        %v505 = vsel %vm237, %v429, 0
        %v508 = vsel %vm237, %v430, 0
        %v511 = vsel %vm237, %v431, 0
        %v514 = vsel %vm237, %v432, 0
        %v517 = vsel %vm237, %v433, 0
        %v520 = vsel %vm237, %v434, 0
        %v523 = vsel %vm237, %v435, 0
        %v526 = vsel %vm237, %v436, 0
        %v529 = vsel %vm237, %v437, 0
        %v532 = vsel %vm237, %v438, 0
        %v535 = vsel %vm237, %v439, 0
        %v538 = vsel %vm237, %v440, 0
        %v541 = vsel %vm237, %v441, 0
        %543 = vmatprep.subr.mxu0 0.0
        %544 = vmatpush1.xpose.msra.mxu0 %v493
        %545 = vmatprep.subr.mxu0 0.0
        %546 = vmatpush1.xpose.msra.mxu0 %v490
        %547 = vmatprep.subr.mxu0 0.0
        %548 = vmatpush1.xpose.msra.mxu0 %v487
        %549 = vmatprep.subr.mxu0 0.0
        %550 = vmatpush1.xpose.msra.mxu0 %v484
        %551 = vmatprep.subr.mxu0 0.0
        %552 = vmatpush1.xpose.msra.mxu0 %v481
        %553 = vmatprep.subr.mxu0 0.0
        %554 = vmatpush1.xpose.msra.mxu0 %v478
        %555 = vmatprep.subr.mxu0 0.0
        %556 = vmatpush1.xpose.msra.mxu0 %v475
        %557 = vmatprep.subr.mxu0 0.0
        %558 = vmatpush1.xpose.msra.mxu0 %v472
        %559 = vmatprep.subr.mxu0 0.0
        %560 = vmatpush1.xpose.msra.mxu0 %v469
        %561 = vmatprep.subr.mxu0 0.0
        %562 = vmatpush1.xpose.msra.mxu0 %v466
        %563 = vmatprep.subr.mxu0 0.0
        %564 = vmatpush1.xpose.msra.mxu0 %v463
        %565 = vmatprep.subr.mxu0 0.0
        %566 = vmatpush1.xpose.msra.mxu0 %v460
        %567 = vmatprep.subr.mxu0 0.0
        %568 = vmatpush1.xpose.msra.mxu0 %v457
        %569 = vmatprep.subr.mxu0 0.0
        %570 = vmatpush1.xpose.msra.mxu0 %v454
        %571 = vmatprep.subr.mxu0 0.0
        %572 = vmatpush1.xpose.msra.mxu0 %v451
        %573 = vmatprep.subr.mxu0 0.0
        %574 = vmatpush1.xpose.msra.mxu0 %v448
        %575 = vmatprep.subr.mxu0 0.0
        %576 = vmatpush2.xpose.msra.mxu0 %v541
        %577 = vmatprep.subr.mxu0 0.0
        %578 = vmatpush2.xpose.msra.mxu0 %v538
        %579 = vmatprep.subr.mxu0 0.0
        %580 = vmatpush2.xpose.msra.mxu0 %v535
        %581 = vmatprep.subr.mxu0 0.0
        %582 = vmatpush2.xpose.msra.mxu0 %v532
        %583 = vmatprep.subr.mxu0 0.0
        %584 = vmatpush2.xpose.msra.mxu0 %v529
        %585 = vmatprep.subr.mxu0 0.0
        %586 = vmatpush2.xpose.msra.mxu0 %v526
        %587 = vmatprep.subr.mxu0 0.0
        %588 = vmatpush2.xpose.msra.mxu0 %v523
        %589 = vmatprep.subr.mxu0 0.0
        %590 = vmatpush2.xpose.msra.mxu0 %v520
        %591 = vmatprep.subr.mxu0 0.0
        %592 = vmatpush2.xpose.msra.mxu0 %v517
        %593 = vmatprep.subr.mxu0 0.0
        %594 = vmatpush2.xpose.msra.mxu0 %v514
        %595 = vmatprep.subr.mxu0 0.0
        %596 = vmatpush2.xpose.msra.mxu0 %v511
        %597 = vmatprep.subr.mxu0 0.0
        %598 = vmatpush2.xpose.msra.mxu0 %v508
        %599 = vmatprep.subr.mxu0 0.0
        %600 = vmatpush2.xpose.msra.mxu0 %v505
        %601 = vmatprep.subr.mxu0 0.0
        %602 = vmatpush2.xpose.msra.mxu0 %v502
        %603 = vmatprep.subr.mxu0 0.0
        %604 = vmatpush2.xpose.msra.mxu0 %v499
        %605 = vmatprep.subr.mxu0 0.0
        %606 = vmatpush2.xpose.msra.mxu0 %v496
        %607 = vmatprep.mubr.f32.mxu0 0.0
        %608 = vmatmul.mubr.f32.gmra.mxu0 %v445
        %v609 = vpop.f32.mrf.mxu0
        %v610 = vadd.f32 0.0, %v609
        %v611 = vpop.f32.mrf.mxu0
        %v612 = vadd.f32 0.0, %v611
        %613 = vdwg.mxu0
        %v614 = vadd.f32 %v408, %v610
        %v615 = vadd.f32 %v409, %v612
        %v616 = vld [vmem:[%s196 + $0x2] sm:$0xff]
        %v617 = vld [vmem:[%s196 + $0xa] sm:$0xff]
        %v618 = vld [vmem:[%s196 + $0x1a] sm:$0xff]
        %v619 = vld [vmem:[%s196 + $0x22] sm:$0xff]
        %v620 = vld [vmem:[%s196 + $0x32] sm:$0xff]
        %v621 = vld [vmem:[%s196 + $0x3a] sm:$0xff]
        %v622 = vld [vmem:[%s196 + $0x4a] sm:$0xff]
        %v623 = vld [vmem:[%s196 + $0x52] sm:$0xff]
        %v624 = vld [vmem:[%s196 + $0x62] sm:$0xff]
        %v625 = vld [vmem:[%s196 + $0x6a] sm:$0xff]
        %v626 = vld [vmem:[%s196 + $0x7a] sm:$0xff]
        %v627 = vld [vmem:[%s196 + $0x82] sm:$0xff]
        %v628 = vld [vmem:[%s196 + $0x92] sm:$0xff]
        %v629 = vld [vmem:[%s196 + $0x9a] sm:$0xff]
        %v630 = vld [vmem:[%s196 + $0xaa] sm:$0xff]
        %v631 = vld [vmem:[%s196 + $0xb2] sm:$0xff]
        %v632 = vld [vmem:[%s196 + $0xc2] sm:$0xff]
        %v633 = vld [vmem:[%s196 + $0xca] sm:$0xff]
        %v634 = vld [vmem:[%s196 + $0xda] sm:$0xff]
        %v635 = vld [vmem:[%s196 + $0xe2] sm:$0xff]
        %v636 = vld [vmem:[%s196 + $0xf2] sm:$0xff]
        %v637 = vld [vmem:[%s196 + $0xfa] sm:$0xff]
        %v638 = vld [vmem:[%s196 + $0x10a] sm:$0xff]
        %v639 = vld [vmem:[%s196 + $0x112] sm:$0xff]
        %v640 = vld [vmem:[%s196 + $0x122] sm:$0xff]
        %v641 = vld [vmem:[%s196 + $0x12a] sm:$0xff]
        %v642 = vld [vmem:[%s196 + $0x13a] sm:$0xff]
        %v643 = vld [vmem:[%s196 + $0x142] sm:$0xff]
        %v644 = vld [vmem:[%s196 + $0x152] sm:$0xff]
        %v645 = vld [vmem:[%s196 + $0x15a] sm:$0xff]
        %v646 = vld [vmem:[%s196 + $0x16a] sm:$0xff]
        %v647 = vld [vmem:[%s196 + $0x172] sm:$0xff]
        %s648 = scalar_lea.vmem %s1, 16
        %v649 = vld [vmem:[%s648] sm:$0xff]
        %v651 = vsel %vm237, %v649, 0
        %v654 = vsel %vm237, %v616, 0
        %v657 = vsel %vm237, %v617, 0
        %v660 = vsel %vm237, %v618, 0
        %v663 = vsel %vm237, %v619, 0
        %v666 = vsel %vm237, %v620, 0
        %v669 = vsel %vm237, %v621, 0
        %v672 = vsel %vm237, %v622, 0
        %v675 = vsel %vm237, %v623, 0
        %v678 = vsel %vm237, %v624, 0
        %v681 = vsel %vm237, %v625, 0
        %v684 = vsel %vm237, %v626, 0
        %v687 = vsel %vm237, %v627, 0
        %v690 = vsel %vm237, %v628, 0
        %v693 = vsel %vm237, %v629, 0
        %v696 = vsel %vm237, %v630, 0
        %v699 = vsel %vm237, %v631, 0
        %v702 = vsel %vm237, %v632, 0
        %v705 = vsel %vm237, %v633, 0
        %v708 = vsel %vm237, %v634, 0
        %v711 = vsel %vm237, %v635, 0
        %v714 = vsel %vm237, %v636, 0
        %v717 = vsel %vm237, %v637, 0
        %v720 = vsel %vm237, %v638, 0
        %v723 = vsel %vm237, %v639, 0
        %v726 = vsel %vm237, %v640, 0
        %v729 = vsel %vm237, %v641, 0
        %v732 = vsel %vm237, %v642, 0
        %v735 = vsel %vm237, %v643, 0
        %v738 = vsel %vm237, %v644, 0
        %v741 = vsel %vm237, %v645, 0
        %v744 = vsel %vm237, %v646, 0
        %v747 = vsel %vm237, %v647, 0
        %749 = vmatprep.subr.mxu0 0.0
        %750 = vmatpush1.xpose.msra.mxu0 %v699
        %751 = vmatprep.subr.mxu0 0.0
        %752 = vmatpush1.xpose.msra.mxu0 %v696
        %753 = vmatprep.subr.mxu0 0.0
        %754 = vmatpush1.xpose.msra.mxu0 %v693
        %755 = vmatprep.subr.mxu0 0.0
        %756 = vmatpush1.xpose.msra.mxu0 %v690
        %757 = vmatprep.subr.mxu0 0.0
        %758 = vmatpush1.xpose.msra.mxu0 %v687
        %759 = vmatprep.subr.mxu0 0.0
        %760 = vmatpush1.xpose.msra.mxu0 %v684
        %761 = vmatprep.subr.mxu0 0.0
        %762 = vmatpush1.xpose.msra.mxu0 %v681
        %763 = vmatprep.subr.mxu0 0.0
        %764 = vmatpush1.xpose.msra.mxu0 %v678
        %765 = vmatprep.subr.mxu0 0.0
        %766 = vmatpush1.xpose.msra.mxu0 %v675
        %767 = vmatprep.subr.mxu0 0.0
        %768 = vmatpush1.xpose.msra.mxu0 %v672
        %769 = vmatprep.subr.mxu0 0.0
        %770 = vmatpush1.xpose.msra.mxu0 %v669
        %771 = vmatprep.subr.mxu0 0.0
        %772 = vmatpush1.xpose.msra.mxu0 %v666
        %773 = vmatprep.subr.mxu0 0.0
        %774 = vmatpush1.xpose.msra.mxu0 %v663
        %775 = vmatprep.subr.mxu0 0.0
        %776 = vmatpush1.xpose.msra.mxu0 %v660
        %777 = vmatprep.subr.mxu0 0.0
        %778 = vmatpush1.xpose.msra.mxu0 %v657
        %779 = vmatprep.subr.mxu0 0.0
        %780 = vmatpush1.xpose.msra.mxu0 %v654
        %781 = vmatprep.subr.mxu0 0.0
        %782 = vmatpush2.xpose.msra.mxu0 %v747
        %783 = vmatprep.subr.mxu0 0.0
        %784 = vmatpush2.xpose.msra.mxu0 %v744
        %785 = vmatprep.subr.mxu0 0.0
        %786 = vmatpush2.xpose.msra.mxu0 %v741
        %787 = vmatprep.subr.mxu0 0.0
        %788 = vmatpush2.xpose.msra.mxu0 %v738
        %789 = vmatprep.subr.mxu0 0.0
        %790 = vmatpush2.xpose.msra.mxu0 %v735
        %791 = vmatprep.subr.mxu0 0.0
        %792 = vmatpush2.xpose.msra.mxu0 %v732
        %793 = vmatprep.subr.mxu0 0.0
        %794 = vmatpush2.xpose.msra.mxu0 %v729
        %795 = vmatprep.subr.mxu0 0.0
        %796 = vmatpush2.xpose.msra.mxu0 %v726
        %797 = vmatprep.subr.mxu0 0.0
        %798 = vmatpush2.xpose.msra.mxu0 %v723
        %799 = vmatprep.subr.mxu0 0.0
        %800 = vmatpush2.xpose.msra.mxu0 %v720
        %801 = vmatprep.subr.mxu0 0.0
        %802 = vmatpush2.xpose.msra.mxu0 %v717
        %803 = vmatprep.subr.mxu0 0.0
        %804 = vmatpush2.xpose.msra.mxu0 %v714
        %805 = vmatprep.subr.mxu0 0.0
        %806 = vmatpush2.xpose.msra.mxu0 %v711
        %807 = vmatprep.subr.mxu0 0.0
        %808 = vmatpush2.xpose.msra.mxu0 %v708
        %809 = vmatprep.subr.mxu0 0.0
        %810 = vmatpush2.xpose.msra.mxu0 %v705
        %811 = vmatprep.subr.mxu0 0.0
        %812 = vmatpush2.xpose.msra.mxu0 %v702
        %813 = vmatprep.mubr.f32.mxu0 0.0
        %814 = vmatmul.mubr.f32.gmra.mxu0 %v651
        %v815 = vpop.f32.mrf.mxu0
        %v816 = vadd.f32 0.0, %v815
        %v817 = vpop.f32.mrf.mxu0
        %v818 = vadd.f32 0.0, %v817
        %819 = vdwg.mxu0
        %v820 = vadd.f32 %v614, %v816
        %v821 = vadd.f32 %v615, %v818
        %s822 = scalar_lea.vmem %s196, 24
        %v823 = vld [vmem:[%s822] sm:$0xff]
        %v824 = vld [vmem:[%s822 + $0x8] sm:$0xff]
        %v825 = vld [vmem:[%s822 + $0x18] sm:$0xff]
        %v826 = vld [vmem:[%s822 + $0x20] sm:$0xff]
        %v827 = vld [vmem:[%s822 + $0x30] sm:$0xff]
        %v828 = vld [vmem:[%s822 + $0x38] sm:$0xff]
        %v829 = vld [vmem:[%s822 + $0x48] sm:$0xff]
        %v830 = vld [vmem:[%s822 + $0x50] sm:$0xff]
        %v831 = vld [vmem:[%s822 + $0x60] sm:$0xff]
        %v832 = vld [vmem:[%s822 + $0x68] sm:$0xff]
        %v833 = vld [vmem:[%s822 + $0x78] sm:$0xff]
        %v834 = vld [vmem:[%s822 + $0x80] sm:$0xff]
        %v835 = vld [vmem:[%s822 + $0x90] sm:$0xff]
        %v836 = vld [vmem:[%s822 + $0x98] sm:$0xff]
        %v837 = vld [vmem:[%s822 + $0xa8] sm:$0xff]
        %v838 = vld [vmem:[%s822 + $0xb0] sm:$0xff]
        %v839 = vld [vmem:[%s822 + $0xc0] sm:$0xff]
        %v840 = vld [vmem:[%s822 + $0xc8] sm:$0xff]
        %v841 = vld [vmem:[%s822 + $0xd8] sm:$0xff]
        %v842 = vld [vmem:[%s822 + $0xe0] sm:$0xff]
        %v843 = vld [vmem:[%s822 + $0xf0] sm:$0xff]
        %v844 = vld [vmem:[%s822 + $0xf8] sm:$0xff]
        %v845 = vld [vmem:[%s822 + $0x108] sm:$0xff]
        %v846 = vld [vmem:[%s822 + $0x110] sm:$0xff]
        %v847 = vld [vmem:[%s822 + $0x120] sm:$0xff]
        %v848 = vld [vmem:[%s822 + $0x128] sm:$0xff]
        %v849 = vld [vmem:[%s822 + $0x138] sm:$0xff]
        %v850 = vld [vmem:[%s822 + $0x140] sm:$0xff]
        %v851 = vld [vmem:[%s822 + $0x150] sm:$0xff]
        %v852 = vld [vmem:[%s822 + $0x158] sm:$0xff]
        %v853 = vld [vmem:[%s822 + $0x168] sm:$0xff]
        %v854 = vld [vmem:[%s822 + $0x170] sm:$0xff]
        %s855 = scalar_lea.vmem %s1, 24
        %v856 = vld [vmem:[%s855] sm:$0xff]
        %v858 = vsel %vm237, %v856, 0
        %v861 = vsel %vm237, %v823, 0
        %v864 = vsel %vm237, %v824, 0
        %v867 = vsel %vm237, %v825, 0
        %v870 = vsel %vm237, %v826, 0
        %v873 = vsel %vm237, %v827, 0
        %v876 = vsel %vm237, %v828, 0
        %v879 = vsel %vm237, %v829, 0
        %v882 = vsel %vm237, %v830, 0
        %v885 = vsel %vm237, %v831, 0
        %v888 = vsel %vm237, %v832, 0
        %v891 = vsel %vm237, %v833, 0
        %v894 = vsel %vm237, %v834, 0
        %v897 = vsel %vm237, %v835, 0
        %v900 = vsel %vm237, %v836, 0
        %v903 = vsel %vm237, %v837, 0
        %v906 = vsel %vm237, %v838, 0
        %v909 = vsel %vm237, %v839, 0
        %v912 = vsel %vm237, %v840, 0
        %v915 = vsel %vm237, %v841, 0
        %v918 = vsel %vm237, %v842, 0
        %v921 = vsel %vm237, %v843, 0
        %v924 = vsel %vm237, %v844, 0
        %v927 = vsel %vm237, %v845, 0
        %v930 = vsel %vm237, %v846, 0
        %v933 = vsel %vm237, %v847, 0
        %v936 = vsel %vm237, %v848, 0
        %v939 = vsel %vm237, %v849, 0
        %v942 = vsel %vm237, %v850, 0
        %v945 = vsel %vm237, %v851, 0
        %v948 = vsel %vm237, %v852, 0
        %v951 = vsel %vm237, %v853, 0
        %v954 = vsel %vm237, %v854, 0
        %956 = vmatprep.subr.mxu0 0.0
        %957 = vmatpush1.xpose.msra.mxu0 %v906
        %958 = vmatprep.subr.mxu0 0.0
        %959 = vmatpush1.xpose.msra.mxu0 %v903
        %960 = vmatprep.subr.mxu0 0.0
        %961 = vmatpush1.xpose.msra.mxu0 %v900
        %962 = vmatprep.subr.mxu0 0.0
        %963 = vmatpush1.xpose.msra.mxu0 %v897
        %964 = vmatprep.subr.mxu0 0.0
        %965 = vmatpush1.xpose.msra.mxu0 %v894
        %966 = vmatprep.subr.mxu0 0.0
        %967 = vmatpush1.xpose.msra.mxu0 %v891
        %968 = vmatprep.subr.mxu0 0.0
        %969 = vmatpush1.xpose.msra.mxu0 %v888
        %970 = vmatprep.subr.mxu0 0.0
        %971 = vmatpush1.xpose.msra.mxu0 %v885
        %972 = vmatprep.subr.mxu0 0.0
        %973 = vmatpush1.xpose.msra.mxu0 %v882
        %974 = vmatprep.subr.mxu0 0.0
        %975 = vmatpush1.xpose.msra.mxu0 %v879
        %976 = vmatprep.subr.mxu0 0.0
        %977 = vmatpush1.xpose.msra.mxu0 %v876
        %978 = vmatprep.subr.mxu0 0.0
        %979 = vmatpush1.xpose.msra.mxu0 %v873
        %980 = vmatprep.subr.mxu0 0.0
        %981 = vmatpush1.xpose.msra.mxu0 %v870
        %982 = vmatprep.subr.mxu0 0.0
        %983 = vmatpush1.xpose.msra.mxu0 %v867
        %984 = vmatprep.subr.mxu0 0.0
        %985 = vmatpush1.xpose.msra.mxu0 %v864
        %986 = vmatprep.subr.mxu0 0.0
        %987 = vmatpush1.xpose.msra.mxu0 %v861
        %988 = vmatprep.subr.mxu0 0.0
        %989 = vmatpush2.xpose.msra.mxu0 %v954
        %990 = vmatprep.subr.mxu0 0.0
        %991 = vmatpush2.xpose.msra.mxu0 %v951
        %992 = vmatprep.subr.mxu0 0.0
        %993 = vmatpush2.xpose.msra.mxu0 %v948
        %994 = vmatprep.subr.mxu0 0.0
        %995 = vmatpush2.xpose.msra.mxu0 %v945
        %996 = vmatprep.subr.mxu0 0.0
        %997 = vmatpush2.xpose.msra.mxu0 %v942
        %998 = vmatprep.subr.mxu0 0.0
        %999 = vmatpush2.xpose.msra.mxu0 %v939
        %1000 = vmatprep.subr.mxu0 0.0
        %1001 = vmatpush2.xpose.msra.mxu0 %v936
        %1002 = vmatprep.subr.mxu0 0.0
        %1003 = vmatpush2.xpose.msra.mxu0 %v933
        %1004 = vmatprep.subr.mxu0 0.0
        %1005 = vmatpush2.xpose.msra.mxu0 %v930
        %1006 = vmatprep.subr.mxu0 0.0
        %1007 = vmatpush2.xpose.msra.mxu0 %v927
        %1008 = vmatprep.subr.mxu0 0.0
        %1009 = vmatpush2.xpose.msra.mxu0 %v924
        %1010 = vmatprep.subr.mxu0 0.0
        %1011 = vmatpush2.xpose.msra.mxu0 %v921
        %1012 = vmatprep.subr.mxu0 0.0
        %1013 = vmatpush2.xpose.msra.mxu0 %v918
        %1014 = vmatprep.subr.mxu0 0.0
        %1015 = vmatpush2.xpose.msra.mxu0 %v915
        %1016 = vmatprep.subr.mxu0 0.0
        %1017 = vmatpush2.xpose.msra.mxu0 %v912
        %1018 = vmatprep.subr.mxu0 0.0
        %1019 = vmatpush2.xpose.msra.mxu0 %v909
        %1020 = vmatprep.mubr.f32.mxu0 0.0
        %1021 = vmatmul.mubr.f32.gmra.mxu0 %v858
        %v1022 = vpop.f32.mrf.mxu0
        %v1023 = vadd.f32 0.0, %v1022
        %v1024 = vpop.f32.mrf.mxu0
        %v1025 = vadd.f32 0.0, %v1024
        %1026 = vdwg.mxu0
        %v1027 = vadd.f32 %v820, %v1023
        %v1028 = vadd.f32 %v821, %v1025
        %v1029 = vld [vmem:[%s822 + $0x1] sm:$0xff]
        %v1030 = vld [vmem:[%s822 + $0x9] sm:$0xff]
        %v1031 = vld [vmem:[%s822 + $0x19] sm:$0xff]
        %v1032 = vld [vmem:[%s822 + $0x21] sm:$0xff]
        %v1033 = vld [vmem:[%s822 + $0x31] sm:$0xff]
        %v1034 = vld [vmem:[%s822 + $0x39] sm:$0xff]
        %v1035 = vld [vmem:[%s822 + $0x49] sm:$0xff]
        %v1036 = vld [vmem:[%s822 + $0x51] sm:$0xff]
        %v1037 = vld [vmem:[%s822 + $0x61] sm:$0xff]
        %v1038 = vld [vmem:[%s822 + $0x69] sm:$0xff]
        %v1039 = vld [vmem:[%s822 + $0x79] sm:$0xff]
        %v1040 = vld [vmem:[%s822 + $0x81] sm:$0xff]
        %v1041 = vld [vmem:[%s822 + $0x91] sm:$0xff]
        %v1042 = vld [vmem:[%s822 + $0x99] sm:$0xff]
        %v1043 = vld [vmem:[%s822 + $0xa9] sm:$0xff]
        %v1044 = vld [vmem:[%s822 + $0xb1] sm:$0xff]
        %v1045 = vld [vmem:[%s822 + $0xc1] sm:$0xff]
        %v1046 = vld [vmem:[%s822 + $0xc9] sm:$0xff]
        %v1047 = vld [vmem:[%s822 + $0xd9] sm:$0xff]
        %v1048 = vld [vmem:[%s822 + $0xe1] sm:$0xff]
        %v1049 = vld [vmem:[%s822 + $0xf1] sm:$0xff]
        %v1050 = vld [vmem:[%s822 + $0xf9] sm:$0xff]
        %v1051 = vld [vmem:[%s822 + $0x109] sm:$0xff]
        %v1052 = vld [vmem:[%s822 + $0x111] sm:$0xff]
        %v1053 = vld [vmem:[%s822 + $0x121] sm:$0xff]
        %v1054 = vld [vmem:[%s822 + $0x129] sm:$0xff]
        %v1055 = vld [vmem:[%s822 + $0x139] sm:$0xff]
        %v1056 = vld [vmem:[%s822 + $0x141] sm:$0xff]
        %v1057 = vld [vmem:[%s822 + $0x151] sm:$0xff]
        %v1058 = vld [vmem:[%s822 + $0x159] sm:$0xff]
        %v1059 = vld [vmem:[%s822 + $0x169] sm:$0xff]
        %v1060 = vld [vmem:[%s822 + $0x171] sm:$0xff]
        %s1061 = scalar_lea.vmem %s1, 32
        %v1062 = vld [vmem:[%s1061] sm:$0xff]
        %v1064 = vsel %vm237, %v1062, 0
        %v1067 = vsel %vm237, %v1029, 0
        %v1070 = vsel %vm237, %v1030, 0
        %v1073 = vsel %vm237, %v1031, 0
        %v1076 = vsel %vm237, %v1032, 0
        %v1079 = vsel %vm237, %v1033, 0
        %v1082 = vsel %vm237, %v1034, 0
        %v1085 = vsel %vm237, %v1035, 0
        %v1088 = vsel %vm237, %v1036, 0
        %v1091 = vsel %vm237, %v1037, 0
        %v1094 = vsel %vm237, %v1038, 0
        %v1097 = vsel %vm237, %v1039, 0
        %v1100 = vsel %vm237, %v1040, 0
        %v1103 = vsel %vm237, %v1041, 0
        %v1106 = vsel %vm237, %v1042, 0
        %v1109 = vsel %vm237, %v1043, 0
        %v1112 = vsel %vm237, %v1044, 0
        %v1115 = vsel %vm237, %v1045, 0
        %v1118 = vsel %vm237, %v1046, 0
        %v1121 = vsel %vm237, %v1047, 0
        %v1124 = vsel %vm237, %v1048, 0
        %v1127 = vsel %vm237, %v1049, 0
        %v1130 = vsel %vm237, %v1050, 0
        %v1133 = vsel %vm237, %v1051, 0
        %v1136 = vsel %vm237, %v1052, 0
        %v1139 = vsel %vm237, %v1053, 0
        %v1142 = vsel %vm237, %v1054, 0
        %v1145 = vsel %vm237, %v1055, 0
        %v1148 = vsel %vm237, %v1056, 0
        %v1151 = vsel %vm237, %v1057, 0
        %v1154 = vsel %vm237, %v1058, 0
        %v1157 = vsel %vm237, %v1059, 0
        %v1160 = vsel %vm237, %v1060, 0
        %1162 = vmatprep.subr.mxu0 0.0
        %1163 = vmatpush1.xpose.msra.mxu0 %v1112
        %1164 = vmatprep.subr.mxu0 0.0
        %1165 = vmatpush1.xpose.msra.mxu0 %v1109
        %1166 = vmatprep.subr.mxu0 0.0
        %1167 = vmatpush1.xpose.msra.mxu0 %v1106
        %1168 = vmatprep.subr.mxu0 0.0
        %1169 = vmatpush1.xpose.msra.mxu0 %v1103
        %1170 = vmatprep.subr.mxu0 0.0
        %1171 = vmatpush1.xpose.msra.mxu0 %v1100
        %1172 = vmatprep.subr.mxu0 0.0
        %1173 = vmatpush1.xpose.msra.mxu0 %v1097
        %1174 = vmatprep.subr.mxu0 0.0
        %1175 = vmatpush1.xpose.msra.mxu0 %v1094
        %1176 = vmatprep.subr.mxu0 0.0
        %1177 = vmatpush1.xpose.msra.mxu0 %v1091
        %1178 = vmatprep.subr.mxu0 0.0
        %1179 = vmatpush1.xpose.msra.mxu0 %v1088
        %1180 = vmatprep.subr.mxu0 0.0
        %1181 = vmatpush1.xpose.msra.mxu0 %v1085
        %1182 = vmatprep.subr.mxu0 0.0
        %1183 = vmatpush1.xpose.msra.mxu0 %v1082
        %1184 = vmatprep.subr.mxu0 0.0
        %1185 = vmatpush1.xpose.msra.mxu0 %v1079
        %1186 = vmatprep.subr.mxu0 0.0
        %1187 = vmatpush1.xpose.msra.mxu0 %v1076
        %1188 = vmatprep.subr.mxu0 0.0
        %1189 = vmatpush1.xpose.msra.mxu0 %v1073
        %1190 = vmatprep.subr.mxu0 0.0
        %1191 = vmatpush1.xpose.msra.mxu0 %v1070
        %1192 = vmatprep.subr.mxu0 0.0
        %1193 = vmatpush1.xpose.msra.mxu0 %v1067
        %1194 = vmatprep.subr.mxu0 0.0
        %1195 = vmatpush2.xpose.msra.mxu0 %v1160
        %1196 = vmatprep.subr.mxu0 0.0
        %1197 = vmatpush2.xpose.msra.mxu0 %v1157
        %1198 = vmatprep.subr.mxu0 0.0
        %1199 = vmatpush2.xpose.msra.mxu0 %v1154
        %1200 = vmatprep.subr.mxu0 0.0
        %1201 = vmatpush2.xpose.msra.mxu0 %v1151
        %1202 = vmatprep.subr.mxu0 0.0
        %1203 = vmatpush2.xpose.msra.mxu0 %v1148
        %1204 = vmatprep.subr.mxu0 0.0
        %1205 = vmatpush2.xpose.msra.mxu0 %v1145
        %1206 = vmatprep.subr.mxu0 0.0
        %1207 = vmatpush2.xpose.msra.mxu0 %v1142
        %1208 = vmatprep.subr.mxu0 0.0
        %1209 = vmatpush2.xpose.msra.mxu0 %v1139
        %1210 = vmatprep.subr.mxu0 0.0
        %1211 = vmatpush2.xpose.msra.mxu0 %v1136
        %1212 = vmatprep.subr.mxu0 0.0
        %1213 = vmatpush2.xpose.msra.mxu0 %v1133
        %1214 = vmatprep.subr.mxu0 0.0
        %1215 = vmatpush2.xpose.msra.mxu0 %v1130
        %1216 = vmatprep.subr.mxu0 0.0
        %1217 = vmatpush2.xpose.msra.mxu0 %v1127
        %1218 = vmatprep.subr.mxu0 0.0
        %1219 = vmatpush2.xpose.msra.mxu0 %v1124
        %1220 = vmatprep.subr.mxu0 0.0
        %1221 = vmatpush2.xpose.msra.mxu0 %v1121
        %1222 = vmatprep.subr.mxu0 0.0
        %1223 = vmatpush2.xpose.msra.mxu0 %v1118
        %1224 = vmatprep.subr.mxu0 0.0
        %1225 = vmatpush2.xpose.msra.mxu0 %v1115
        %1226 = vmatprep.mubr.f32.mxu0 0.0
        %1227 = vmatmul.mubr.f32.gmra.mxu0 %v1064
        %v1228 = vpop.f32.mrf.mxu0
        %v1229 = vadd.f32 0.0, %v1228
        %v1230 = vpop.f32.mrf.mxu0
        %v1231 = vadd.f32 0.0, %v1230
        %1232 = vdwg.mxu0
        %v1233 = vadd.f32 %v1027, %v1229
        %v1234 = vadd.f32 %v1028, %v1231
        %v1235 = vld [vmem:[%s822 + $0x2] sm:$0xff]
        %v1236 = vld [vmem:[%s822 + $0xa] sm:$0xff]
        %v1237 = vld [vmem:[%s822 + $0x1a] sm:$0xff]
        %v1238 = vld [vmem:[%s822 + $0x22] sm:$0xff]
        %v1239 = vld [vmem:[%s822 + $0x32] sm:$0xff]
        %v1240 = vld [vmem:[%s822 + $0x3a] sm:$0xff]
        %v1241 = vld [vmem:[%s822 + $0x4a] sm:$0xff]
        %v1242 = vld [vmem:[%s822 + $0x52] sm:$0xff]
        %v1243 = vld [vmem:[%s822 + $0x62] sm:$0xff]
        %v1244 = vld [vmem:[%s822 + $0x6a] sm:$0xff]
        %v1245 = vld [vmem:[%s822 + $0x7a] sm:$0xff]
        %v1246 = vld [vmem:[%s822 + $0x82] sm:$0xff]
        %v1247 = vld [vmem:[%s822 + $0x92] sm:$0xff]
        %v1248 = vld [vmem:[%s822 + $0x9a] sm:$0xff]
        %v1249 = vld [vmem:[%s822 + $0xaa] sm:$0xff]
        %v1250 = vld [vmem:[%s822 + $0xb2] sm:$0xff]
        %v1251 = vld [vmem:[%s822 + $0xc2] sm:$0xff]
        %v1252 = vld [vmem:[%s822 + $0xca] sm:$0xff]
        %v1253 = vld [vmem:[%s822 + $0xda] sm:$0xff]
        %v1254 = vld [vmem:[%s822 + $0xe2] sm:$0xff]
        %v1255 = vld [vmem:[%s822 + $0xf2] sm:$0xff]
        %v1256 = vld [vmem:[%s822 + $0xfa] sm:$0xff]
        %v1257 = vld [vmem:[%s822 + $0x10a] sm:$0xff]
        %v1258 = vld [vmem:[%s822 + $0x112] sm:$0xff]
        %v1259 = vld [vmem:[%s822 + $0x122] sm:$0xff]
        %v1260 = vld [vmem:[%s822 + $0x12a] sm:$0xff]
        %v1261 = vld [vmem:[%s822 + $0x13a] sm:$0xff]
        %v1262 = vld [vmem:[%s822 + $0x142] sm:$0xff]
        %v1263 = vld [vmem:[%s822 + $0x152] sm:$0xff]
        %v1264 = vld [vmem:[%s822 + $0x15a] sm:$0xff]
        %v1265 = vld [vmem:[%s822 + $0x16a] sm:$0xff]
        %v1266 = vld [vmem:[%s822 + $0x172] sm:$0xff]
        %s1267 = scalar_lea.vmem %s1, 40
        %v1268 = vld [vmem:[%s1267] sm:$0xff]
        %v1270 = vsel %vm237, %v1268, 0
        %v1273 = vsel %vm237, %v1235, 0
        %v1276 = vsel %vm237, %v1236, 0
        %v1279 = vsel %vm237, %v1237, 0
        %v1282 = vsel %vm237, %v1238, 0
        %v1285 = vsel %vm237, %v1239, 0
        %v1288 = vsel %vm237, %v1240, 0
        %v1291 = vsel %vm237, %v1241, 0
        %v1294 = vsel %vm237, %v1242, 0
        %v1297 = vsel %vm237, %v1243, 0
        %v1300 = vsel %vm237, %v1244, 0
        %v1303 = vsel %vm237, %v1245, 0
        %v1306 = vsel %vm237, %v1246, 0
        %v1309 = vsel %vm237, %v1247, 0
        %v1312 = vsel %vm237, %v1248, 0
        %v1315 = vsel %vm237, %v1249, 0
        %v1318 = vsel %vm237, %v1250, 0
        %v1321 = vsel %vm237, %v1251, 0
        %v1324 = vsel %vm237, %v1252, 0
        %v1327 = vsel %vm237, %v1253, 0
        %v1330 = vsel %vm237, %v1254, 0
        %v1333 = vsel %vm237, %v1255, 0
        %v1336 = vsel %vm237, %v1256, 0
        %v1339 = vsel %vm237, %v1257, 0
        %v1342 = vsel %vm237, %v1258, 0
        %v1345 = vsel %vm237, %v1259, 0
        %v1348 = vsel %vm237, %v1260, 0
        %v1351 = vsel %vm237, %v1261, 0
        %v1354 = vsel %vm237, %v1262, 0
        %v1357 = vsel %vm237, %v1263, 0
        %v1360 = vsel %vm237, %v1264, 0
        %v1363 = vsel %vm237, %v1265, 0
        %v1366 = vsel %vm237, %v1266, 0
        %1368 = vmatprep.subr.mxu0 0.0
        %1369 = vmatpush1.xpose.msra.mxu0 %v1318
        %1370 = vmatprep.subr.mxu0 0.0
        %1371 = vmatpush1.xpose.msra.mxu0 %v1315
        %1372 = vmatprep.subr.mxu0 0.0
        %1373 = vmatpush1.xpose.msra.mxu0 %v1312
        %1374 = vmatprep.subr.mxu0 0.0
        %1375 = vmatpush1.xpose.msra.mxu0 %v1309
        %1376 = vmatprep.subr.mxu0 0.0
        %1377 = vmatpush1.xpose.msra.mxu0 %v1306
        %1378 = vmatprep.subr.mxu0 0.0
        %1379 = vmatpush1.xpose.msra.mxu0 %v1303
        %1380 = vmatprep.subr.mxu0 0.0
        %1381 = vmatpush1.xpose.msra.mxu0 %v1300
        %1382 = vmatprep.subr.mxu0 0.0
        %1383 = vmatpush1.xpose.msra.mxu0 %v1297
        %1384 = vmatprep.subr.mxu0 0.0
        %1385 = vmatpush1.xpose.msra.mxu0 %v1294
        %1386 = vmatprep.subr.mxu0 0.0
        %1387 = vmatpush1.xpose.msra.mxu0 %v1291
        %1388 = vmatprep.subr.mxu0 0.0
        %1389 = vmatpush1.xpose.msra.mxu0 %v1288
        %1390 = vmatprep.subr.mxu0 0.0
        %1391 = vmatpush1.xpose.msra.mxu0 %v1285
        %1392 = vmatprep.subr.mxu0 0.0
        %1393 = vmatpush1.xpose.msra.mxu0 %v1282
        %1394 = vmatprep.subr.mxu0 0.0
        %1395 = vmatpush1.xpose.msra.mxu0 %v1279
        %1396 = vmatprep.subr.mxu0 0.0
        %1397 = vmatpush1.xpose.msra.mxu0 %v1276
        %1398 = vmatprep.subr.mxu0 0.0
        %1399 = vmatpush1.xpose.msra.mxu0 %v1273
        %1400 = vmatprep.subr.mxu0 0.0
        %1401 = vmatpush2.xpose.msra.mxu0 %v1366
        %1402 = vmatprep.subr.mxu0 0.0
        %1403 = vmatpush2.xpose.msra.mxu0 %v1363
        %1404 = vmatprep.subr.mxu0 0.0
        %1405 = vmatpush2.xpose.msra.mxu0 %v1360
        %1406 = vmatprep.subr.mxu0 0.0
        %1407 = vmatpush2.xpose.msra.mxu0 %v1357
        %1408 = vmatprep.subr.mxu0 0.0
        %1409 = vmatpush2.xpose.msra.mxu0 %v1354
        %1410 = vmatprep.subr.mxu0 0.0
        %1411 = vmatpush2.xpose.msra.mxu0 %v1351
        %1412 = vmatprep.subr.mxu0 0.0
        %1413 = vmatpush2.xpose.msra.mxu0 %v1348
        %1414 = vmatprep.subr.mxu0 0.0
        %1415 = vmatpush2.xpose.msra.mxu0 %v1345
        %1416 = vmatprep.subr.mxu0 0.0
        %1417 = vmatpush2.xpose.msra.mxu0 %v1342
        %1418 = vmatprep.subr.mxu0 0.0
        %1419 = vmatpush2.xpose.msra.mxu0 %v1339
        %1420 = vmatprep.subr.mxu0 0.0
        %1421 = vmatpush2.xpose.msra.mxu0 %v1336
        %1422 = vmatprep.subr.mxu0 0.0
        %1423 = vmatpush2.xpose.msra.mxu0 %v1333
        %1424 = vmatprep.subr.mxu0 0.0
        %1425 = vmatpush2.xpose.msra.mxu0 %v1330
        %1426 = vmatprep.subr.mxu0 0.0
        %1427 = vmatpush2.xpose.msra.mxu0 %v1327
        %1428 = vmatprep.subr.mxu0 0.0
        %1429 = vmatpush2.xpose.msra.mxu0 %v1324
        %1430 = vmatprep.subr.mxu0 0.0
        %1431 = vmatpush2.xpose.msra.mxu0 %v1321
        %1432 = vmatprep.mubr.f32.mxu0 0.0
        %1433 = vmatmul.mubr.f32.gmra.mxu0 %v1270
        %v1434 = vpop.f32.mrf.mxu0
        %v1435 = vadd.f32 0.0, %v1434
        %v1436 = vpop.f32.mrf.mxu0
        %v1437 = vadd.f32 0.0, %v1436
        %1438 = vdwg.mxu0
        %v1439 = vadd.f32 %v1233, %v1435
        %v1440 = vadd.f32 %v1234, %v1437
        %s1441 = scalar_lea.vmem %s196, 48
        %v1442 = vld [vmem:[%s1441] sm:$0xff]
        %v1443 = vld [vmem:[%s1441 + $0x8] sm:$0xff]
        %v1444 = vld [vmem:[%s1441 + $0x18] sm:$0xff]
        %v1445 = vld [vmem:[%s1441 + $0x20] sm:$0xff]
        %v1446 = vld [vmem:[%s1441 + $0x30] sm:$0xff]
        %v1447 = vld [vmem:[%s1441 + $0x38] sm:$0xff]
        %v1448 = vld [vmem:[%s1441 + $0x48] sm:$0xff]
        %v1449 = vld [vmem:[%s1441 + $0x50] sm:$0xff]
        %v1450 = vld [vmem:[%s1441 + $0x60] sm:$0xff]
        %v1451 = vld [vmem:[%s1441 + $0x68] sm:$0xff]
        %v1452 = vld [vmem:[%s1441 + $0x78] sm:$0xff]
        %v1453 = vld [vmem:[%s1441 + $0x80] sm:$0xff]
        %v1454 = vld [vmem:[%s1441 + $0x90] sm:$0xff]
        %v1455 = vld [vmem:[%s1441 + $0x98] sm:$0xff]
        %v1456 = vld [vmem:[%s1441 + $0xa8] sm:$0xff]
        %v1457 = vld [vmem:[%s1441 + $0xb0] sm:$0xff]
        %v1458 = vld [vmem:[%s1441 + $0xc0] sm:$0xff]
        %v1459 = vld [vmem:[%s1441 + $0xc8] sm:$0xff]
        %v1460 = vld [vmem:[%s1441 + $0xd8] sm:$0xff]
        %v1461 = vld [vmem:[%s1441 + $0xe0] sm:$0xff]
        %v1462 = vld [vmem:[%s1441 + $0xf0] sm:$0xff]
        %v1463 = vld [vmem:[%s1441 + $0xf8] sm:$0xff]
        %v1464 = vld [vmem:[%s1441 + $0x108] sm:$0xff]
        %v1465 = vld [vmem:[%s1441 + $0x110] sm:$0xff]
        %v1466 = vld [vmem:[%s1441 + $0x120] sm:$0xff]
        %v1467 = vld [vmem:[%s1441 + $0x128] sm:$0xff]
        %v1468 = vld [vmem:[%s1441 + $0x138] sm:$0xff]
        %v1469 = vld [vmem:[%s1441 + $0x140] sm:$0xff]
        %v1470 = vld [vmem:[%s1441 + $0x150] sm:$0xff]
        %v1471 = vld [vmem:[%s1441 + $0x158] sm:$0xff]
        %v1472 = vld [vmem:[%s1441 + $0x168] sm:$0xff]
        %v1473 = vld [vmem:[%s1441 + $0x170] sm:$0xff]
        %s1474 = scalar_lea.vmem %s1, 48
        %v1475 = vld [vmem:[%s1474] sm:$0xff]
        %v1477 = vsel %vm237, %v1475, 0
        %v1480 = vsel %vm237, %v1442, 0
        %v1483 = vsel %vm237, %v1443, 0
        %v1486 = vsel %vm237, %v1444, 0
        %v1489 = vsel %vm237, %v1445, 0
        %v1492 = vsel %vm237, %v1446, 0
        %v1495 = vsel %vm237, %v1447, 0
        %v1498 = vsel %vm237, %v1448, 0
        %v1501 = vsel %vm237, %v1449, 0
        %v1504 = vsel %vm237, %v1450, 0
        %v1507 = vsel %vm237, %v1451, 0
        %v1510 = vsel %vm237, %v1452, 0
        %v1513 = vsel %vm237, %v1453, 0
        %v1516 = vsel %vm237, %v1454, 0
        %v1519 = vsel %vm237, %v1455, 0
        %v1522 = vsel %vm237, %v1456, 0
        %v1525 = vsel %vm237, %v1457, 0
        %v1528 = vsel %vm237, %v1458, 0
        %v1531 = vsel %vm237, %v1459, 0
        %v1534 = vsel %vm237, %v1460, 0
        %v1537 = vsel %vm237, %v1461, 0
        %v1540 = vsel %vm237, %v1462, 0
        %v1543 = vsel %vm237, %v1463, 0
        %v1546 = vsel %vm237, %v1464, 0
        %v1549 = vsel %vm237, %v1465, 0
        %v1552 = vsel %vm237, %v1466, 0
        %v1555 = vsel %vm237, %v1467, 0
        %v1558 = vsel %vm237, %v1468, 0
        %v1561 = vsel %vm237, %v1469, 0
        %v1564 = vsel %vm237, %v1470, 0
        %v1567 = vsel %vm237, %v1471, 0
        %v1570 = vsel %vm237, %v1472, 0
        %v1573 = vsel %vm237, %v1473, 0
        %1575 = vmatprep.subr.mxu0 0.0
        %1576 = vmatpush1.xpose.msra.mxu0 %v1525
        %1577 = vmatprep.subr.mxu0 0.0
        %1578 = vmatpush1.xpose.msra.mxu0 %v1522
        %1579 = vmatprep.subr.mxu0 0.0
        %1580 = vmatpush1.xpose.msra.mxu0 %v1519
        %1581 = vmatprep.subr.mxu0 0.0
        %1582 = vmatpush1.xpose.msra.mxu0 %v1516
        %1583 = vmatprep.subr.mxu0 0.0
        %1584 = vmatpush1.xpose.msra.mxu0 %v1513
        %1585 = vmatprep.subr.mxu0 0.0
        %1586 = vmatpush1.xpose.msra.mxu0 %v1510
        %1587 = vmatprep.subr.mxu0 0.0
        %1588 = vmatpush1.xpose.msra.mxu0 %v1507
        %1589 = vmatprep.subr.mxu0 0.0
        %1590 = vmatpush1.xpose.msra.mxu0 %v1504
        %1591 = vmatprep.subr.mxu0 0.0
        %1592 = vmatpush1.xpose.msra.mxu0 %v1501
        %1593 = vmatprep.subr.mxu0 0.0
        %1594 = vmatpush1.xpose.msra.mxu0 %v1498
        %1595 = vmatprep.subr.mxu0 0.0
        %1596 = vmatpush1.xpose.msra.mxu0 %v1495
        %1597 = vmatprep.subr.mxu0 0.0
        %1598 = vmatpush1.xpose.msra.mxu0 %v1492
        %1599 = vmatprep.subr.mxu0 0.0
        %1600 = vmatpush1.xpose.msra.mxu0 %v1489
        %1601 = vmatprep.subr.mxu0 0.0
        %1602 = vmatpush1.xpose.msra.mxu0 %v1486
        %1603 = vmatprep.subr.mxu0 0.0
        %1604 = vmatpush1.xpose.msra.mxu0 %v1483
        %1605 = vmatprep.subr.mxu0 0.0
        %1606 = vmatpush1.xpose.msra.mxu0 %v1480
        %1607 = vmatprep.subr.mxu0 0.0
        %1608 = vmatpush2.xpose.msra.mxu0 %v1573
        %1609 = vmatprep.subr.mxu0 0.0
        %1610 = vmatpush2.xpose.msra.mxu0 %v1570
        %1611 = vmatprep.subr.mxu0 0.0
        %1612 = vmatpush2.xpose.msra.mxu0 %v1567
        %1613 = vmatprep.subr.mxu0 0.0
        %1614 = vmatpush2.xpose.msra.mxu0 %v1564
        %1615 = vmatprep.subr.mxu0 0.0
        %1616 = vmatpush2.xpose.msra.mxu0 %v1561
        %1617 = vmatprep.subr.mxu0 0.0
        %1618 = vmatpush2.xpose.msra.mxu0 %v1558
        %1619 = vmatprep.subr.mxu0 0.0
        %1620 = vmatpush2.xpose.msra.mxu0 %v1555
        %1621 = vmatprep.subr.mxu0 0.0
        %1622 = vmatpush2.xpose.msra.mxu0 %v1552
        %1623 = vmatprep.subr.mxu0 0.0
        %1624 = vmatpush2.xpose.msra.mxu0 %v1549
        %1625 = vmatprep.subr.mxu0 0.0
        %1626 = vmatpush2.xpose.msra.mxu0 %v1546
        %1627 = vmatprep.subr.mxu0 0.0
        %1628 = vmatpush2.xpose.msra.mxu0 %v1543
        %1629 = vmatprep.subr.mxu0 0.0
        %1630 = vmatpush2.xpose.msra.mxu0 %v1540
        %1631 = vmatprep.subr.mxu0 0.0
        %1632 = vmatpush2.xpose.msra.mxu0 %v1537
        %1633 = vmatprep.subr.mxu0 0.0
        %1634 = vmatpush2.xpose.msra.mxu0 %v1534
        %1635 = vmatprep.subr.mxu0 0.0
        %1636 = vmatpush2.xpose.msra.mxu0 %v1531
        %1637 = vmatprep.subr.mxu0 0.0
        %1638 = vmatpush2.xpose.msra.mxu0 %v1528
        %1639 = vmatprep.mubr.f32.mxu0 0.0
        %1640 = vmatmul.mubr.f32.gmra.mxu0 %v1477
        %v1641 = vpop.f32.mrf.mxu0
        %v1642 = vadd.f32 0.0, %v1641
        %v1643 = vpop.f32.mrf.mxu0
        %v1644 = vadd.f32 0.0, %v1643
        %1645 = vdwg.mxu0
        %v1646 = vadd.f32 %v1439, %v1642
        %v1647 = vadd.f32 %v1440, %v1644
        %v1648 = vld [vmem:[%s1441 + $0x1] sm:$0xff]
        %v1649 = vld [vmem:[%s1441 + $0x9] sm:$0xff]
        %v1650 = vld [vmem:[%s1441 + $0x19] sm:$0xff]
        %v1651 = vld [vmem:[%s1441 + $0x21] sm:$0xff]
        %v1652 = vld [vmem:[%s1441 + $0x31] sm:$0xff]
        %v1653 = vld [vmem:[%s1441 + $0x39] sm:$0xff]
        %v1654 = vld [vmem:[%s1441 + $0x49] sm:$0xff]
        %v1655 = vld [vmem:[%s1441 + $0x51] sm:$0xff]
        %v1656 = vld [vmem:[%s1441 + $0x61] sm:$0xff]
        %v1657 = vld [vmem:[%s1441 + $0x69] sm:$0xff]
        %v1658 = vld [vmem:[%s1441 + $0x79] sm:$0xff]
        %v1659 = vld [vmem:[%s1441 + $0x81] sm:$0xff]
        %v1660 = vld [vmem:[%s1441 + $0x91] sm:$0xff]
        %v1661 = vld [vmem:[%s1441 + $0x99] sm:$0xff]
        %v1662 = vld [vmem:[%s1441 + $0xa9] sm:$0xff]
        %v1663 = vld [vmem:[%s1441 + $0xb1] sm:$0xff]
        %v1664 = vld [vmem:[%s1441 + $0xc1] sm:$0xff]
        %v1665 = vld [vmem:[%s1441 + $0xc9] sm:$0xff]
        %v1666 = vld [vmem:[%s1441 + $0xd9] sm:$0xff]
        %v1667 = vld [vmem:[%s1441 + $0xe1] sm:$0xff]
        %v1668 = vld [vmem:[%s1441 + $0xf1] sm:$0xff]
        %v1669 = vld [vmem:[%s1441 + $0xf9] sm:$0xff]
        %v1670 = vld [vmem:[%s1441 + $0x109] sm:$0xff]
        %v1671 = vld [vmem:[%s1441 + $0x111] sm:$0xff]
        %v1672 = vld [vmem:[%s1441 + $0x121] sm:$0xff]
        %v1673 = vld [vmem:[%s1441 + $0x129] sm:$0xff]
        %v1674 = vld [vmem:[%s1441 + $0x139] sm:$0xff]
        %v1675 = vld [vmem:[%s1441 + $0x141] sm:$0xff]
        %v1676 = vld [vmem:[%s1441 + $0x151] sm:$0xff]
        %v1677 = vld [vmem:[%s1441 + $0x159] sm:$0xff]
        %v1678 = vld [vmem:[%s1441 + $0x169] sm:$0xff]
        %v1679 = vld [vmem:[%s1441 + $0x171] sm:$0xff]
        %s1680 = scalar_lea.vmem %s1, 56
        %v1681 = vld [vmem:[%s1680] sm:$0xff]
        %v1683 = vsel %vm237, %v1681, 0
        %v1686 = vsel %vm237, %v1648, 0
        %v1689 = vsel %vm237, %v1649, 0
        %v1692 = vsel %vm237, %v1650, 0
        %v1695 = vsel %vm237, %v1651, 0
        %v1698 = vsel %vm237, %v1652, 0
        %v1701 = vsel %vm237, %v1653, 0
        %v1704 = vsel %vm237, %v1654, 0
        %v1707 = vsel %vm237, %v1655, 0
        %v1710 = vsel %vm237, %v1656, 0
        %v1713 = vsel %vm237, %v1657, 0
        %v1716 = vsel %vm237, %v1658, 0
        %v1719 = vsel %vm237, %v1659, 0
        %v1722 = vsel %vm237, %v1660, 0
        %v1725 = vsel %vm237, %v1661, 0
        %v1728 = vsel %vm237, %v1662, 0
        %v1731 = vsel %vm237, %v1663, 0
        %v1734 = vsel %vm237, %v1664, 0
        %v1737 = vsel %vm237, %v1665, 0
        %v1740 = vsel %vm237, %v1666, 0
        %v1743 = vsel %vm237, %v1667, 0
        %v1746 = vsel %vm237, %v1668, 0
        %v1749 = vsel %vm237, %v1669, 0
        %v1752 = vsel %vm237, %v1670, 0
        %v1755 = vsel %vm237, %v1671, 0
        %v1758 = vsel %vm237, %v1672, 0
        %v1761 = vsel %vm237, %v1673, 0
        %v1764 = vsel %vm237, %v1674, 0
        %v1767 = vsel %vm237, %v1675, 0
        %v1770 = vsel %vm237, %v1676, 0
        %v1773 = vsel %vm237, %v1677, 0
        %v1776 = vsel %vm237, %v1678, 0
        %v1779 = vsel %vm237, %v1679, 0
        %1781 = vmatprep.subr.mxu0 0.0
        %1782 = vmatpush1.xpose.msra.mxu0 %v1731
        %1783 = vmatprep.subr.mxu0 0.0
        %1784 = vmatpush1.xpose.msra.mxu0 %v1728
        %1785 = vmatprep.subr.mxu0 0.0
        %1786 = vmatpush1.xpose.msra.mxu0 %v1725
        %1787 = vmatprep.subr.mxu0 0.0
        %1788 = vmatpush1.xpose.msra.mxu0 %v1722
        %1789 = vmatprep.subr.mxu0 0.0
        %1790 = vmatpush1.xpose.msra.mxu0 %v1719
        %1791 = vmatprep.subr.mxu0 0.0
        %1792 = vmatpush1.xpose.msra.mxu0 %v1716
        %1793 = vmatprep.subr.mxu0 0.0
        %1794 = vmatpush1.xpose.msra.mxu0 %v1713
        %1795 = vmatprep.subr.mxu0 0.0
        %1796 = vmatpush1.xpose.msra.mxu0 %v1710
        %1797 = vmatprep.subr.mxu0 0.0
        %1798 = vmatpush1.xpose.msra.mxu0 %v1707
        %1799 = vmatprep.subr.mxu0 0.0
        %1800 = vmatpush1.xpose.msra.mxu0 %v1704
        %1801 = vmatprep.subr.mxu0 0.0
        %1802 = vmatpush1.xpose.msra.mxu0 %v1701
        %1803 = vmatprep.subr.mxu0 0.0
        %1804 = vmatpush1.xpose.msra.mxu0 %v1698
        %1805 = vmatprep.subr.mxu0 0.0
        %1806 = vmatpush1.xpose.msra.mxu0 %v1695
        %1807 = vmatprep.subr.mxu0 0.0
        %1808 = vmatpush1.xpose.msra.mxu0 %v1692
        %1809 = vmatprep.subr.mxu0 0.0
        %1810 = vmatpush1.xpose.msra.mxu0 %v1689
        %1811 = vmatprep.subr.mxu0 0.0
        %1812 = vmatpush1.xpose.msra.mxu0 %v1686
        %1813 = vmatprep.subr.mxu0 0.0
        %1814 = vmatpush2.xpose.msra.mxu0 %v1779
        %1815 = vmatprep.subr.mxu0 0.0
        %1816 = vmatpush2.xpose.msra.mxu0 %v1776
        %1817 = vmatprep.subr.mxu0 0.0
        %1818 = vmatpush2.xpose.msra.mxu0 %v1773
        %1819 = vmatprep.subr.mxu0 0.0
        %1820 = vmatpush2.xpose.msra.mxu0 %v1770
        %1821 = vmatprep.subr.mxu0 0.0
        %1822 = vmatpush2.xpose.msra.mxu0 %v1767
        %1823 = vmatprep.subr.mxu0 0.0
        %1824 = vmatpush2.xpose.msra.mxu0 %v1764
        %1825 = vmatprep.subr.mxu0 0.0
        %1826 = vmatpush2.xpose.msra.mxu0 %v1761
        %1827 = vmatprep.subr.mxu0 0.0
        %1828 = vmatpush2.xpose.msra.mxu0 %v1758
        %1829 = vmatprep.subr.mxu0 0.0
        %1830 = vmatpush2.xpose.msra.mxu0 %v1755
        %1831 = vmatprep.subr.mxu0 0.0
        %1832 = vmatpush2.xpose.msra.mxu0 %v1752
        %1833 = vmatprep.subr.mxu0 0.0
        %1834 = vmatpush2.xpose.msra.mxu0 %v1749
        %1835 = vmatprep.subr.mxu0 0.0
        %1836 = vmatpush2.xpose.msra.mxu0 %v1746
        %1837 = vmatprep.subr.mxu0 0.0
        %1838 = vmatpush2.xpose.msra.mxu0 %v1743
        %1839 = vmatprep.subr.mxu0 0.0
        %1840 = vmatpush2.xpose.msra.mxu0 %v1740
        %1841 = vmatprep.subr.mxu0 0.0
        %1842 = vmatpush2.xpose.msra.mxu0 %v1737
        %1843 = vmatprep.subr.mxu0 0.0
        %1844 = vmatpush2.xpose.msra.mxu0 %v1734
        %1845 = vmatprep.mubr.f32.mxu0 0.0
        %1846 = vmatmul.mubr.f32.gmra.mxu0 %v1683
        %v1847 = vpop.f32.mrf.mxu0
        %v1848 = vadd.f32 0.0, %v1847
        %v1849 = vpop.f32.mrf.mxu0
        %v1850 = vadd.f32 0.0, %v1849
        %1851 = vdwg.mxu0
        %v1852 = vadd.f32 %v1646, %v1848
        %v1853 = vadd.f32 %v1647, %v1850
        %v1854 = vld [vmem:[%s1441 + $0x2] sm:$0xff]
        %v1855 = vld [vmem:[%s1441 + $0xa] sm:$0xff]
        %v1856 = vld [vmem:[%s1441 + $0x1a] sm:$0xff]
        %v1857 = vld [vmem:[%s1441 + $0x22] sm:$0xff]
        %v1858 = vld [vmem:[%s1441 + $0x32] sm:$0xff]
        %v1859 = vld [vmem:[%s1441 + $0x3a] sm:$0xff]
        %v1860 = vld [vmem:[%s1441 + $0x4a] sm:$0xff]
        %v1861 = vld [vmem:[%s1441 + $0x52] sm:$0xff]
        %v1862 = vld [vmem:[%s1441 + $0x62] sm:$0xff]
        %v1863 = vld [vmem:[%s1441 + $0x6a] sm:$0xff]
        %v1864 = vld [vmem:[%s1441 + $0x7a] sm:$0xff]
        %v1865 = vld [vmem:[%s1441 + $0x82] sm:$0xff]
        %v1866 = vld [vmem:[%s1441 + $0x92] sm:$0xff]
        %v1867 = vld [vmem:[%s1441 + $0x9a] sm:$0xff]
        %v1868 = vld [vmem:[%s1441 + $0xaa] sm:$0xff]
        %v1869 = vld [vmem:[%s1441 + $0xb2] sm:$0xff]
        %v1870 = vld [vmem:[%s1441 + $0xc2] sm:$0xff]
        %v1871 = vld [vmem:[%s1441 + $0xca] sm:$0xff]
        %v1872 = vld [vmem:[%s1441 + $0xda] sm:$0xff]
        %v1873 = vld [vmem:[%s1441 + $0xe2] sm:$0xff]
        %v1874 = vld [vmem:[%s1441 + $0xf2] sm:$0xff]
        %v1875 = vld [vmem:[%s1441 + $0xfa] sm:$0xff]
        %v1876 = vld [vmem:[%s1441 + $0x10a] sm:$0xff]
        %v1877 = vld [vmem:[%s1441 + $0x112] sm:$0xff]
        %v1878 = vld [vmem:[%s1441 + $0x122] sm:$0xff]
        %v1879 = vld [vmem:[%s1441 + $0x12a] sm:$0xff]
        %v1880 = vld [vmem:[%s1441 + $0x13a] sm:$0xff]
        %v1881 = vld [vmem:[%s1441 + $0x142] sm:$0xff]
        %v1882 = vld [vmem:[%s1441 + $0x152] sm:$0xff]
        %v1883 = vld [vmem:[%s1441 + $0x15a] sm:$0xff]
        %v1884 = vld [vmem:[%s1441 + $0x16a] sm:$0xff]
        %v1885 = vld [vmem:[%s1441 + $0x172] sm:$0xff]
        %s1886 = scalar_lea.vmem %s1, 64
        %v1887 = vld [vmem:[%s1886] sm:$0xff]
        %v1889 = vsel %vm237, %v1887, 0
        %v1892 = vsel %vm237, %v1854, 0
        %v1895 = vsel %vm237, %v1855, 0
        %v1898 = vsel %vm237, %v1856, 0
        %v1901 = vsel %vm237, %v1857, 0
        %v1904 = vsel %vm237, %v1858, 0
        %v1907 = vsel %vm237, %v1859, 0
        %v1910 = vsel %vm237, %v1860, 0
        %v1913 = vsel %vm237, %v1861, 0
        %v1916 = vsel %vm237, %v1862, 0
        %v1919 = vsel %vm237, %v1863, 0
        %v1922 = vsel %vm237, %v1864, 0
        %v1925 = vsel %vm237, %v1865, 0
        %v1928 = vsel %vm237, %v1866, 0
        %v1931 = vsel %vm237, %v1867, 0
        %v1934 = vsel %vm237, %v1868, 0
        %v1937 = vsel %vm237, %v1869, 0
        %v1940 = vsel %vm237, %v1870, 0
        %v1943 = vsel %vm237, %v1871, 0
        %v1946 = vsel %vm237, %v1872, 0
        %v1949 = vsel %vm237, %v1873, 0
        %v1952 = vsel %vm237, %v1874, 0
        %v1955 = vsel %vm237, %v1875, 0
        %v1958 = vsel %vm237, %v1876, 0
        %v1961 = vsel %vm237, %v1877, 0
        %v1964 = vsel %vm237, %v1878, 0
        %v1967 = vsel %vm237, %v1879, 0
        %v1970 = vsel %vm237, %v1880, 0
        %v1973 = vsel %vm237, %v1881, 0
        %v1976 = vsel %vm237, %v1882, 0
        %v1979 = vsel %vm237, %v1883, 0
        %v1982 = vsel %vm237, %v1884, 0
        %v1985 = vsel %vm237, %v1885, 0
        %1987 = vmatprep.subr.mxu0 0.0
        %1988 = vmatpush1.xpose.msra.mxu0 %v1937
        %1989 = vmatprep.subr.mxu0 0.0
        %1990 = vmatpush1.xpose.msra.mxu0 %v1934
        %1991 = vmatprep.subr.mxu0 0.0
        %1992 = vmatpush1.xpose.msra.mxu0 %v1931
        %1993 = vmatprep.subr.mxu0 0.0
        %1994 = vmatpush1.xpose.msra.mxu0 %v1928
        %1995 = vmatprep.subr.mxu0 0.0
        %1996 = vmatpush1.xpose.msra.mxu0 %v1925
        %1997 = vmatprep.subr.mxu0 0.0
        %1998 = vmatpush1.xpose.msra.mxu0 %v1922
        %1999 = vmatprep.subr.mxu0 0.0
        %2000 = vmatpush1.xpose.msra.mxu0 %v1919
        %2001 = vmatprep.subr.mxu0 0.0
        %2002 = vmatpush1.xpose.msra.mxu0 %v1916
        %2003 = vmatprep.subr.mxu0 0.0
        %2004 = vmatpush1.xpose.msra.mxu0 %v1913
        %2005 = vmatprep.subr.mxu0 0.0
        %2006 = vmatpush1.xpose.msra.mxu0 %v1910
        %2007 = vmatprep.subr.mxu0 0.0
        %2008 = vmatpush1.xpose.msra.mxu0 %v1907
        %2009 = vmatprep.subr.mxu0 0.0
        %2010 = vmatpush1.xpose.msra.mxu0 %v1904
        %2011 = vmatprep.subr.mxu0 0.0
        %2012 = vmatpush1.xpose.msra.mxu0 %v1901
        %2013 = vmatprep.subr.mxu0 0.0
        %2014 = vmatpush1.xpose.msra.mxu0 %v1898
        %2015 = vmatprep.subr.mxu0 0.0
        %2016 = vmatpush1.xpose.msra.mxu0 %v1895
        %2017 = vmatprep.subr.mxu0 0.0
        %2018 = vmatpush1.xpose.msra.mxu0 %v1892
        %2019 = vmatprep.subr.mxu0 0.0
        %2020 = vmatpush2.xpose.msra.mxu0 %v1985
        %2021 = vmatprep.subr.mxu0 0.0
        %2022 = vmatpush2.xpose.msra.mxu0 %v1982
        %2023 = vmatprep.subr.mxu0 0.0
        %2024 = vmatpush2.xpose.msra.mxu0 %v1979
        %2025 = vmatprep.subr.mxu0 0.0
        %2026 = vmatpush2.xpose.msra.mxu0 %v1976
        %2027 = vmatprep.subr.mxu0 0.0
        %2028 = vmatpush2.xpose.msra.mxu0 %v1973
        %2029 = vmatprep.subr.mxu0 0.0
        %2030 = vmatpush2.xpose.msra.mxu0 %v1970
        %2031 = vmatprep.subr.mxu0 0.0
        %2032 = vmatpush2.xpose.msra.mxu0 %v1967
        %2033 = vmatprep.subr.mxu0 0.0
        %2034 = vmatpush2.xpose.msra.mxu0 %v1964
        %2035 = vmatprep.subr.mxu0 0.0
        %2036 = vmatpush2.xpose.msra.mxu0 %v1961
        %2037 = vmatprep.subr.mxu0 0.0
        %2038 = vmatpush2.xpose.msra.mxu0 %v1958
        %2039 = vmatprep.subr.mxu0 0.0
        %2040 = vmatpush2.xpose.msra.mxu0 %v1955
        %2041 = vmatprep.subr.mxu0 0.0
        %2042 = vmatpush2.xpose.msra.mxu0 %v1952
        %2043 = vmatprep.subr.mxu0 0.0
        %2044 = vmatpush2.xpose.msra.mxu0 %v1949
        %2045 = vmatprep.subr.mxu0 0.0
        %2046 = vmatpush2.xpose.msra.mxu0 %v1946
        %2047 = vmatprep.subr.mxu0 0.0
        %2048 = vmatpush2.xpose.msra.mxu0 %v1943
        %2049 = vmatprep.subr.mxu0 0.0
        %2050 = vmatpush2.xpose.msra.mxu0 %v1940
        %2051 = vmatprep.mubr.f32.mxu0 0.0
        %2052 = vmatmul.mubr.f32.gmra.mxu0 %v1889
        %v2053 = vpop.f32.mrf.mxu0
        %v2054 = vadd.f32 0.0, %v2053
        %v2055 = vpop.f32.mrf.mxu0
        %v2056 = vadd.f32 0.0, %v2055
        %2057 = vdwg.mxu0
        %v2058 = vadd.f32 %v1852, %v2054
        %v2059 = vadd.f32 %v1853, %v2056
        %2060 = vst [vmem:[%s187] sm:$0xff] %v2058
        %2061 = vst [vmem:[%s187 + $0x8] sm:$0xff] %v2059
        %s2062 = sand.u32 %s109, 1
        %s2063 = scalar_lea.sflag [#allocation3], %s2062
        %s2064 = sand.u32 %s109, 1
        %s2065 = smul.addr %s2064, 16
        %s2066 = scalar_lea.vmem [#allocation2], %s2065
        // Predicated region
        $region33: #{tpu_custom_call.1} parent=31 // pred_check
          %p2067 = pneg %p119
        $region34: #{tpu_custom_call.1} parent=31 // pred_check_branch
          %2069 = sbr.rel (%p2067) target = $region36
        $region35: #{tpu_custom_call.1} parent=31 // pred_region
          %s2070 = smul.u32 2, %s22
          %s2072 = ssub.s32 256, 256
          %2073 = vsyncadd %s2063, %s2072
          %s2074 = smul.addr %s21, 2
          %s2075 = sadd.s32 %s2070, %s2074
          %s2076 = smul.addr %s2075, 128
          %s2077 = scalar_lea.hbm %s3, %s2076
          %s2079 = sshll.u32 %s2066, 4
          %s2080 = int_to_ptr.vmem [resolvable:$true] %s2079
          %2082 = dma.vmem_to_hbm [thread:$0]  %s2080, 256, %s2077, %s2063
        $region36: #{tpu_custom_call.1} parent=31 // pred_fallthru
          _
      $region32: #{tpu_custom_call.1} parent=5 // pred_fallthru
        _
      %p2083 = scmp.le.s32.totalorder 2, %s12
      // Predicated region
      $region37: #{tpu_custom_call.1} parent=5 // pred_check
        %p2084 = pneg %p2083
      $region38: #{tpu_custom_call.1} parent=5 // pred_check_branch
        %2086 = sbr.rel (%p2084) target = $region40
      $region39: #{tpu_custom_call.1} parent=5 // pred_region
        %s2087 = ssub.s32 %s12, 2
        // Predicated region
        $region41: #{tpu_custom_call.1} parent=39 // pred_check
          %p2088 = pneg %p125
        $region42: #{tpu_custom_call.1} parent=39 // pred_check_branch
          %2090 = sbr.rel (%p2088) target = $region44
        $region43: #{tpu_custom_call.1} parent=39 // pred_region
          %s2091 = sand.u32 %s110, 1
          %s2092 = scalar_lea.sflag [#allocation3], %s2091
          %s2093 = sand.u32 %s110, 1
          %s2094 = smul.addr %s2093, 16
          %s2095 = scalar_lea.vmem [#allocation2], %s2094
          %2096 = dma.done %s2092, 256
        $region44: #{tpu_custom_call.1} parent=39 // pred_fallthru
          _
      $region40: #{tpu_custom_call.1} parent=5 // pred_fallthru
        _
    $region6: #{tpu_custom_call.1} parent=1 // loop_footer
      %s16 = sadd.s32 1, %s12
    $region7: #{tpu_custom_call.1} parent=1 // loop_footer_branch
      %11 = sbr.rel target = $region3
    $region8: #{tpu_custom_call.1} parent=1 // loop_exit
      _
    %2097 = vsyncpa [#allocation3], 1
    %s2098 = scalar_lea.sflag [#allocation3], 1
    %2099 = vsyncpa %s2098, 1

</llo_original>
